<compile_context>
chip_gen: v6e
topology: v6e:2x2x1
jax: 0.10.0
libtpu: 0.0.40
codegen_flags: <defaults>
</compile_context>

<pallas_src>
import math

import jax
import jax.numpy as jnp
from jax.experimental import pallas as pl
from jax.experimental.pallas import tpu as pltpu


def _fnet_kernel(
    x0_ref,                      # [bb, S, D] f32  (batch-block of embedded inputs)
    dfth_ref,                    # [D, 2D] bf16    hidden-dim DFT (cos | sin)
    cs_ref, ss_ref,              # [bb, S, S] f32  seq-dim DFT cos / sin (batch-broadcast)
    lnp_ref,                     # [1, 5, D] f32   packed: ln1g, ln1b, ln2g, ln2b, b2
    b1_ref,                      # [1, 1, F] f32
    w1_ref,                      # [1, D, F] bf16
    w2_ref,                      # [1, F, D] bf16
    lnf_ref,                     # [2, D] f32      final LN gamma / beta
    wg_ref, bg_ref,              # [D, Cp] bf16 / [1, Cp] f32  (Cp = lane-padded classes)
    out_ref,                     # [1, bb, Cp] f32
    x_ref,                       # scratch [bb, S, D] f32, carried across the layer axis
):
    layer = pl.program_id(1)
    n_layers = pl.num_programs(1)
    bb, seq, d_model = x_ref.shape
    nrows = bb * seq

    @pl.when(layer == 0)
    def _init():
        # src_embed output for this batch block (computed in the wrapper).
        x_ref[...] = x0_ref[...]

    def layer_norm(v, g, b):
        mu = jnp.mean(v, axis=-1, keepdims=True)
        var = jnp.mean(jnp.square(v - mu), axis=-1, keepdims=True)
        return (v - mu) * jax.lax.rsqrt(var + 1e-5) * g + b

    lnp = lnp_ref[0]                                   # [5, D]
    x2 = x_ref[...].reshape(nrows, d_model)            # f32, free reshape (S % 8 == 0)

    # ---- FNet mixing: Re(FFT_seq(FFT_hidden(z))) via real DFT matmuls ----------------
    z = layer_norm(x2, lnp[0:1], lnp[1:2]).astype(jnp.bfloat16)
    # one bf16 matmul with merged (cos | sin) RHS -> full 256-wide MXU N
    y = jnp.dot(z, dfth_ref[...], preferred_element_type=jnp.float32)   # [nrows, 2D]
    yr = y[:, :d_model].reshape(bb, seq, d_model)      #  Re(fft over hidden), f32
    yi = y[:, d_model:].reshape(bb, seq, d_model)      # -Im(fft over hidden), f32
    # seq-axis DFT: batched [S,S] x [S,D] contraction per batch (f32 for accuracy;
    # FLOPs here are negligible versus the hidden-dim stage).
    mix = (jnp.einsum('bst,btd->bsd', cs_ref[...], yr,
                      preferred_element_type=jnp.float32)
           - jnp.einsum('bst,btd->bsd', ss_ref[...], yi,
                        preferred_element_type=jnp.float32))
    x2 = x2 + mix.reshape(nrows, d_model)              # dropout = identity (eval)

    # ---- position-wise feed-forward (ReLU) --------------------------------------------
    z = layer_norm(x2, lnp[2:3], lnp[3:4]).astype(jnp.bfloat16)
    h = jnp.maximum(
        jnp.dot(z, w1_ref[0], preferred_element_type=jnp.float32) + b1_ref[0], 0.0)
    ff = jnp.dot(h.astype(jnp.bfloat16), w2_ref[0],
                 preferred_element_type=jnp.float32) + lnp[4:5]
    x2 = x2 + ff
    x_ref[...] = x2.reshape(bb, seq, d_model)

    # ---- final encoder LayerNorm + generator, last sequence position only -------------
    @pl.when(layer == n_layers - 1)
    def _final():
        lnf = lnf_ref[...]
        last = x2.reshape(bb, seq, d_model)[:, seq - 1, :]          # [bb, D]
        last = layer_norm(last, lnf[0:1], lnf[1:2]).astype(jnp.bfloat16)
        logits = (jnp.dot(last, wg_ref[...], preferred_element_type=jnp.float32)
                  + bg_ref[...])
        out_ref[...] = logits[None]


def transformer_classifier(tokens, params):
    """tokens: int32 [seq, batch] -> (logits [batch, n_classes], None)."""
    seq_len, batch = tokens.shape
    emb_tab = params["emb"]                       # [n_vocab, d_model]
    d_model = emb_tab.shape[1]
    n_layers, _, d_ff = params["w1"].shape
    n_classes = params["wg"].shape[1]
    c_pad = max(128, ((n_classes + 127) // 128) * 128)      # lane-dense generator output

    # ---- batch-block size: "parallel" grid axis (v7x megacore) & per-core VMEM cap ----
    bb = max(1, min(batch, max(1, 512 // seq_len)))         # ~512 rows per block target
    if batch >= 2:
        bb = min(bb, (batch + 1) // 2)                      # >= 2 blocks when possible
    while batch % bb:
        bb -= 1
    n_blocks = batch // bb

    # ---- glue (XLA): token-embedding gather + scale + learned positional encoding -----
    # TODO(synk): the data-dependent embedding gather stays outside the kernel; doing it
    # in-kernel would need manual per-row DMA.
    x0 = (emb_tab[tokens].astype(jnp.float32) * jnp.float32(math.sqrt(d_model))
          + params["pos"][:seq_len, None, :].astype(jnp.float32))        # [S, B, D]
    x0 = jnp.transpose(x0, (1, 0, 2))                                     # [B, S, D]

    # ---- exact real DFT matrices (torch.fft.fft, norm="backward") ---------------------
    kd = jnp.arange(d_model)
    ang_d = (2.0 * jnp.pi / d_model) * ((kd[:, None] * kd[None, :]) % d_model)
    dft_h = jnp.concatenate([jnp.cos(ang_d), jnp.sin(ang_d)],
                            axis=1).astype(jnp.bfloat16)                  # [D, 2D]
    ks = jnp.arange(seq_len)
    ang_s = (2.0 * jnp.pi / seq_len) * ((ks[:, None] * ks[None, :]) % seq_len)
    cs_b = jnp.tile(jnp.cos(ang_s).astype(jnp.float32)[None], (bb, 1, 1))  # [bb, S, S]
    ss_b = jnp.tile(jnp.sin(ang_s).astype(jnp.float32)[None], (bb, 1, 1))

    # ---- per-layer params: small ones packed, matmul weights bf16 ----------------------
    lnp = jnp.stack([params["ln1g"], params["ln1b"], params["ln2g"], params["ln2b"],
                     params["b2"]], axis=1).astype(jnp.float32)            # [L, 5, D]
    b1 = params["b1"].reshape(n_layers, 1, d_ff).astype(jnp.float32)
    w1 = params["w1"].astype(jnp.bfloat16)
    w2 = params["w2"].astype(jnp.bfloat16)
    lnf = jnp.concatenate([params["lnfg"], params["lnfb"]],
                          axis=0).astype(jnp.float32)                      # [2, D]
    wg = jnp.zeros((d_model, c_pad), jnp.float32).at[:, :n_classes].set(
        params["wg"]).astype(jnp.bfloat16)
    bg = jnp.zeros((1, c_pad), jnp.float32).at[:, :n_classes].set(params["bg"])

    def const(shape):
        return pl.BlockSpec(shape, lambda b, l: (0,) * len(shape))

    def per_layer(shape):
        return pl.BlockSpec(shape, lambda b, l: (l,) + (0,) * (len(shape) - 1))

    in_specs = [
        pl.BlockSpec((bb, seq_len, d_model), lambda b, l: (b, 0, 0)),  # x0 per block
        const((d_model, 2 * d_model)),                                 # dft_h
        const((bb, seq_len, seq_len)),                                 # cs_b
        const((bb, seq_len, seq_len)),                                 # ss_b
        per_layer((1, 5, d_model)),                                    # packed ln/b2
        per_layer((1, 1, d_ff)),                                       # b1
        per_layer((1, d_model, d_ff)),                                 # w1
        per_layer((1, d_ff, d_model)),                                 # w2
        const((2, d_model)),                                           # lnf
        const((d_model, c_pad)),                                       # wg
        const((1, c_pad)),                                             # bg
    ]
    out_spec = pl.BlockSpec((1, bb, c_pad), lambda b, l: (b, 0, 0))

    # ---- VMEM budget (double-buffered streamed blocks + scratch + intermediates) ------
    nrows = bb * seq_len
    per_step = (
        nrows * d_model * 4                        # x0 block
        + d_model * 2 * d_model * 2                # dft_h (bf16)
        + 2 * bb * seq_len * seq_len * 4           # cs_b + ss_b
        + (5 * d_model + d_ff) * 4                 # packed params + b1
        + 2 * d_model * d_ff * 2                   # w1 + w2 (bf16)
        + 2 * d_model * 4                          # lnf
        + d_model * c_pad * 2 + c_pad * 4          # wg + bg
        + bb * c_pad * 4                           # out block
    )
    scratch_bytes = nrows * d_model * 4
    interm = nrows * (2 * d_model + d_ff + 4 * d_model) * 4
    # NOTE: on v7x (64 MiB physical VMEM) large configs should shrink bb instead of
    # raising this cap.
    vmem_bytes = int(min(96 * 2**20, max(32 * 2**20,
                                         2 * per_step + scratch_bytes + interm)))

    logits_pad = pl.pallas_call(
        _fnet_kernel,
        out_shape=jax.ShapeDtypeStruct((n_blocks, bb, c_pad), jnp.float32),
        grid_spec=pltpu.PrefetchScalarGridSpec(
            num_scalar_prefetch=0,
            grid=(n_blocks, n_layers),
            in_specs=in_specs,
            out_specs=out_spec,
            scratch_shapes=[pltpu.VMEM((bb, seq_len, d_model), jnp.float32)],
        ),
        compiler_params=pltpu.CompilerParams(
            dimension_semantics=("parallel", "arbitrary"),
            vmem_limit_bytes=vmem_bytes,
        ),
    )(x0, dft_h, cs_b, ss_b, lnp, b1, w1, w2, lnf, wg, bg)

    logits = logits_pad.reshape(batch, c_pad)[:, :n_classes]
    return logits, None


def reference_forward(tokens, params):
    """Pure-JAX reference (uses jnp.fft) mirroring the PyTorch module semantics."""
    d_model = params["emb"].shape[1]
    x = (params["emb"][tokens] * math.sqrt(d_model)
         + params["pos"][: tokens.shape[0], None, :])                    # [S, B, D]

    def ln(v, g, b):
        mu = v.mean(-1, keepdims=True)
        var = jnp.square(v - mu).mean(-1, keepdims=True)
        return (v - mu) / jnp.sqrt(var + 1e-5) * g + b

    n_layers = params["w1"].shape[0]
    for l in range(n_layers):
        z = ln(x, params["ln1g"][l], params["ln1b"][l])
        mix = jnp.real(jnp.fft.fft(jnp.fft.fft(z, axis=2), axis=0))
        x = x + mix
        z = ln(x, params["ln2g"][l], params["ln2b"][l])
        h = jnp.maximum(z @ params["w1"][l] + params["b1"][l], 0.0)
        x = x + h @ params["w2"][l] + params["b2"][l]
    x = ln(x, params["lnfg"][0], params["lnfb"][0])
    return x[-1] @ params["wg"] + params["bg"][0]


if __name__ == "__main__":
    SEQ, BATCH = 8, 2
    D_MODEL, D_FF = 128, 256
    N_LAYERS, N_CLASSES = 2, 4
    N_VOCAB, MAX_LEN = 32, 16

    key = jax.random.PRNGKey(0)
    keys = jax.random.split(key, 9)
    params = {
        "emb": 0.02 * jax.random.normal(keys[0], (N_VOCAB, D_MODEL), jnp.float32),
        "pos": 0.02 * jax.random.normal(keys[1], (MAX_LEN, D_MODEL), jnp.float32),
        "ln1g": jnp.ones((N_LAYERS, D_MODEL), jnp.float32),
        "ln1b": jnp.zeros((N_LAYERS, D_MODEL), jnp.float32),
        "ln2g": jnp.ones((N_LAYERS, D_MODEL), jnp.float32),
        "ln2b": jnp.zeros((N_LAYERS, D_MODEL), jnp.float32),
        "w1": (1.0 / math.sqrt(D_MODEL))
              * jax.random.normal(keys[2], (N_LAYERS, D_MODEL, D_FF), jnp.float32),
        "b1": 0.01 * jax.random.normal(keys[3], (N_LAYERS, D_FF), jnp.float32),
        "w2": (1.0 / math.sqrt(D_FF))
              * jax.random.normal(keys[4], (N_LAYERS, D_FF, D_MODEL), jnp.float32),
        "b2": 0.01 * jax.random.normal(keys[5], (N_LAYERS, D_MODEL), jnp.float32),
        "lnfg": jnp.ones((1, D_MODEL), jnp.float32),
        "lnfb": jnp.zeros((1, D_MODEL), jnp.float32),
        "wg": (1.0 / math.sqrt(D_MODEL))
              * jax.random.normal(keys[6], (D_MODEL, N_CLASSES), jnp.float32),
        "bg": 0.01 * jax.random.normal(keys[7], (1, N_CLASSES), jnp.float32),
    }
    tokens = jax.random.randint(keys[8], (SEQ, BATCH), 0, N_VOCAB, dtype=jnp.int32)

    logits, aux = transformer_classifier(tokens, params)
    logits = jax.block_until_ready(logits)

    ref = reference_forward(tokens, params)
    err = float(jnp.max(jnp.abs(logits - ref)))
    assert logits.shape == (BATCH, N_CLASSES)
    assert aux is None
    # bf16 MXU operands (hidden DFT / FF / generator weights) vs f32 jnp.fft reference
    assert err < 1e-1, f"mismatch vs reference: max abs err = {err}"
    print("KERNEL_OK")
</pallas_src>

<mosaic_0001>
module attributes {stable_mosaic.version = 11 : i64} {
  func.func @_fnet_kernel(%arg0: i32, %arg1: i32, %arg2: memref<1x8x128xf32, #tpu.memory_space<vmem>>, %arg3: memref<128x256xbf16, #tpu.memory_space<vmem>>, %arg4: memref<1x8x8xf32, #tpu.memory_space<vmem>>, %arg5: memref<1x8x8xf32, #tpu.memory_space<vmem>>, %arg6: memref<1x5x128xf32, #tpu.memory_space<vmem>>, %arg7: memref<1x1x256xf32, #tpu.memory_space<vmem>>, %arg8: memref<1x128x256xbf16, #tpu.memory_space<vmem>>, %arg9: memref<1x256x128xbf16, #tpu.memory_space<vmem>>, %arg10: memref<2x128xf32, #tpu.memory_space<vmem>>, %arg11: memref<128x128xbf16, #tpu.memory_space<vmem>>, %arg12: memref<1x128xf32, #tpu.memory_space<vmem>>, %arg13: memref<1x1x128xf32, #tpu.memory_space<vmem>>, %arg14: memref<1x8x128xf32, #tpu.memory_space<vmem>>) attributes {dimension_semantics = [#tpu.dimension_semantics<parallel>, #tpu.dimension_semantics<arbitrary>], iteration_bounds = array<i64: 2, 2>, scalar_prefetch = 0 : i64, scratch_operands = 1 : i64, tpu.core_type = #tpu.core_type<tc>, window_params = [{transform_indices = @transform_0, window_bounds = array<i64: 1, 8, 128>}, {pipeline_mode = #tpu.pipeline_mode<synchronous>, transform_indices = @transform_1, window_bounds = array<i64: 128, 256>}, {pipeline_mode = #tpu.pipeline_mode<synchronous>, transform_indices = @transform_2, window_bounds = array<i64: 1, 8, 8>}, {pipeline_mode = #tpu.pipeline_mode<synchronous>, transform_indices = @transform_3, window_bounds = array<i64: 1, 8, 8>}, {transform_indices = @transform_4, window_bounds = array<i64: 1, 5, 128>}, {transform_indices = @transform_5, window_bounds = array<i64: 1, 1, 256>}, {transform_indices = @transform_6, window_bounds = array<i64: 1, 128, 256>}, {transform_indices = @transform_7, window_bounds = array<i64: 1, 256, 128>}, {pipeline_mode = #tpu.pipeline_mode<synchronous>, transform_indices = @transform_8, window_bounds = array<i64: 2, 128>}, {pipeline_mode = #tpu.pipeline_mode<synchronous>, transform_indices = @transform_9, window_bounds = array<i64: 128, 128>}, {pipeline_mode = #tpu.pipeline_mode<synchronous>, transform_indices = @transform_10, window_bounds = array<i64: 1, 128>}, {transform_indices = @transform_11, window_bounds = array<i64: 1, 1, 128>}]} {
    %c0_i32 = arith.constant 0 : i32
    %0 = arith.cmpi eq, %arg1, %c0_i32 : i32
    %1 = arith.extui %0 : i1 to i32
    %c0_i32_0 = arith.constant 0 : i32
    %2 = arith.cmpi ne, %1, %c0_i32_0 : i32
    scf.if %2 {
      %c0_42 = arith.constant 0 : index
      %c0_43 = arith.constant 0 : index
      %c0_44 = arith.constant 0 : index
      %92 = vector.load %arg2[%c0_42, %c0_43, %c0_44] : memref<1x8x128xf32, #tpu.memory_space<vmem>>, vector<1x8x128xf32>
      %c0_45 = arith.constant 0 : index
      %c0_46 = arith.constant 0 : index
      %c0_47 = arith.constant 0 : index
      %93 = vector.load %arg14[%c0_45, %c0_46, %c0_47] : memref<1x8x128xf32, #tpu.memory_space<vmem>>, vector<1x8x128xf32>
      tpu.vector_store %arg14[%c0_45, %c0_46, %c0_47], %92 {strides = array<i32>} : memref<1x8x128xf32, #tpu.memory_space<vmem>>, vector<1x8x128xf32>,
    } else {
    }
    %c0 = arith.constant 0 : index
    %c0_1 = arith.constant 0 : index
    %c0_2 = arith.constant 0 : index
    %3 = vector.load %arg6[%c0, %c0_1, %c0_2] : memref<1x5x128xf32, #tpu.memory_space<vmem>>, vector<1x5x128xf32>
    %4 = vector.shape_cast %3 : vector<1x5x128xf32> to vector<5x128xf32>
    %c0_3 = arith.constant 0 : index
    %c0_4 = arith.constant 0 : index
    %c0_5 = arith.constant 0 : index
    %5 = vector.load %arg14[%c0_3, %c0_4, %c0_5] : memref<1x8x128xf32, #tpu.memory_space<vmem>>, vector<1x8x128xf32>
    %6 = vector.shape_cast %5 : vector<1x8x128xf32> to vector<8x128xf32>
    %7 = vector.extract_strided_slice %4 {offsets = [0, 0], sizes = [1, 128], strides = [1, 1]} : vector<5x128xf32> to vector<1x128xf32>
    %8 = vector.extract_strided_slice %4 {offsets = [1, 0], sizes = [1, 128], strides = [1, 1]} : vector<5x128xf32> to vector<1x128xf32>
    %cst = arith.constant dense<0.000000e+00> : vector<8xf32>
    %9 = vector.multi_reduction <add>, %6, %cst [1] : vector<8x128xf32> to vector<8xf32>
    %10 = vector.shape_cast %9 : vector<8xf32> to vector<8x1xf32>
    %cst_6 = arith.constant 1.280000e+02 : f32
    %11 = vector.broadcast %cst_6 : f32 to vector<8x1xf32>
    %12 = arith.divf %10, %11 : vector<8x1xf32>
    %13 = vector.broadcast %12 : vector<8x1xf32> to vector<8x128xf32>
    %14 = arith.subf %6, %13 : vector<8x128xf32>
    %15 = arith.mulf %14, %14 : vector<8x128xf32>
    %cst_7 = arith.constant dense<0.000000e+00> : vector<8xf32>
    %16 = vector.multi_reduction <add>, %15, %cst_7 [1] : vector<8x128xf32> to vector<8xf32>
    %17 = vector.shape_cast %16 : vector<8xf32> to vector<8x1xf32>
    %cst_8 = arith.constant 1.280000e+02 : f32
    %18 = vector.broadcast %cst_8 : f32 to vector<8x1xf32>
    %19 = arith.divf %17, %18 : vector<8x1xf32>
    %20 = vector.broadcast %12 : vector<8x1xf32> to vector<8x128xf32>
    %21 = arith.subf %6, %20 : vector<8x128xf32>
    %cst_9 = arith.constant 9.99999974E-6 : f32
    %22 = vector.broadcast %cst_9 : f32 to vector<8x1xf32>
    %23 = arith.addf %19, %22 : vector<8x1xf32>
    %24 = math.rsqrt %23 : vector<8x1xf32>
    %25 = vector.broadcast %24 : vector<8x1xf32> to vector<8x128xf32>
    %26 = arith.mulf %21, %25 : vector<8x128xf32>
    %27 = vector.broadcast %7 : vector<1x128xf32> to vector<8x128xf32>
    %28 = arith.mulf %26, %27 : vector<8x128xf32>
    %29 = vector.broadcast %8 : vector<1x128xf32> to vector<8x128xf32>
    %30 = arith.addf %28, %29 : vector<8x128xf32>
    %31 = arith.truncf %30 : vector<8x128xf32> to vector<8x128xbf16>
    %c0_10 = arith.constant 0 : index
    %c0_11 = arith.constant 0 : index
    %32 = vector.load %arg3[%c0_10, %c0_11] : memref<128x256xbf16, #tpu.memory_space<vmem>>, vector<128x256xbf16>
    %cst_12 = arith.constant dense<0.000000e+00> : vector<8x256xf32>
    %33 = tpu.matmul %31, %32, %cst_12 {dimension_numbers = #tpu.dot_dimension_numbers<[1], [0], [0], [1], [0, 0, 1, 1], [], []>} : vector<8x128xbf16>, vector<128x256xbf16>, vector<8x256xf32> -> vector<8x256xf32>
    %34 = vector.extract_strided_slice %33 {offsets = [0, 0], sizes = [8, 128], strides = [1, 1]} : vector<8x256xf32> to vector<8x128xf32>
    %35 = vector.shape_cast %34 : vector<8x128xf32> to vector<1x8x128xf32>
    %36 = vector.extract_strided_slice %33 {offsets = [0, 128], sizes = [8, 128], strides = [1, 1]} : vector<8x256xf32> to vector<8x128xf32>
    %37 = vector.shape_cast %36 : vector<8x128xf32> to vector<1x8x128xf32>
    %c0_13 = arith.constant 0 : index
    %c0_14 = arith.constant 0 : index
    %c0_15 = arith.constant 0 : index
    %38 = vector.load %arg4[%c0_13, %c0_14, %c0_15] : memref<1x8x8xf32, #tpu.memory_space<vmem>>, vector<1x8x8xf32>
    "tpu.trace_start"() <{level = 10 : i32, message = "bst,btd->bsd"}> : () -> ()
    %cst_16 = arith.constant dense<0.000000e+00> : vector<1x8x128xf32>
    %39 = tpu.matmul %38, %35, %cst_16 {dimension_numbers = #tpu.dot_dimension_numbers<[2], [1], [1], [2], [0, 0, 0, 1, 1, 2], [0], [0]>} : vector<1x8x8xf32>, vector<1x8x128xf32>, vector<1x8x128xf32> -> vector<1x8x128xf32>
    "tpu.trace_stop"() : () -> ()
    %c0_17 = arith.constant 0 : index
    %c0_18 = arith.constant 0 : index
    %c0_19 = arith.constant 0 : index
    %40 = vector.load %arg5[%c0_17, %c0_18, %c0_19] : memref<1x8x8xf32, #tpu.memory_space<vmem>>, vector<1x8x8xf32>
    "tpu.trace_start"() <{level = 10 : i32, message = "bst,btd->bsd"}> : () -> ()
    %cst_20 = arith.constant dense<0.000000e+00> : vector<1x8x128xf32>
    %41 = tpu.matmul %40, %37, %cst_20 {dimension_numbers = #tpu.dot_dimension_numbers<[2], [1], [1], [2], [0, 0, 0, 1, 1, 2], [0], [0]>} : vector<1x8x8xf32>, vector<1x8x128xf32>, vector<1x8x128xf32> -> vector<1x8x128xf32>
    "tpu.trace_stop"() : () -> ()
    %42 = arith.subf %39, %41 : vector<1x8x128xf32>
    %43 = vector.shape_cast %42 : vector<1x8x128xf32> to vector<8x128xf32>
    %44 = arith.addf %6, %43 : vector<8x128xf32>
    %45 = vector.extract_strided_slice %4 {offsets = [2, 0], sizes = [1, 128], strides = [1, 1]} : vector<5x128xf32> to vector<1x128xf32>
    %46 = vector.extract_strided_slice %4 {offsets = [3, 0], sizes = [1, 128], strides = [1, 1]} : vector<5x128xf32> to vector<1x128xf32>
    %cst_21 = arith.constant dense<0.000000e+00> : vector<8xf32>
    %47 = vector.multi_reduction <add>, %44, %cst_21 [1] : vector<8x128xf32> to vector<8xf32>
    %48 = vector.shape_cast %47 : vector<8xf32> to vector<8x1xf32>
    %cst_22 = arith.constant 1.280000e+02 : f32
    %49 = vector.broadcast %cst_22 : f32 to vector<8x1xf32>
    %50 = arith.divf %48, %49 : vector<8x1xf32>
    %51 = vector.broadcast %50 : vector<8x1xf32> to vector<8x128xf32>
    %52 = arith.subf %44, %51 : vector<8x128xf32>
    %53 = arith.mulf %52, %52 : vector<8x128xf32>
    %cst_23 = arith.constant dense<0.000000e+00> : vector<8xf32>
    %54 = vector.multi_reduction <add>, %53, %cst_23 [1] : vector<8x128xf32> to vector<8xf32>
    %55 = vector.shape_cast %54 : vector<8xf32> to vector<8x1xf32>
    %cst_24 = arith.constant 1.280000e+02 : f32
    %56 = vector.broadcast %cst_24 : f32 to vector<8x1xf32>
    %57 = arith.divf %55, %56 : vector<8x1xf32>
    %58 = vector.broadcast %50 : vector<8x1xf32> to vector<8x128xf32>
    %59 = arith.subf %44, %58 : vector<8x128xf32>
    %cst_25 = arith.constant 9.99999974E-6 : f32
    %60 = vector.broadcast %cst_25 : f32 to vector<8x1xf32>
    %61 = arith.addf %57, %60 : vector<8x1xf32>
    %62 = math.rsqrt %61 : vector<8x1xf32>
    %63 = vector.broadcast %62 : vector<8x1xf32> to vector<8x128xf32>
    %64 = arith.mulf %59, %63 : vector<8x128xf32>
    %65 = vector.broadcast %45 : vector<1x128xf32> to vector<8x128xf32>
    %66 = arith.mulf %64, %65 : vector<8x128xf32>
    %67 = vector.broadcast %46 : vector<1x128xf32> to vector<8x128xf32>
    %68 = arith.addf %66, %67 : vector<8x128xf32>
    %69 = arith.truncf %68 : vector<8x128xf32> to vector<8x128xbf16>
    %c0_26 = arith.constant 0 : index
    %c0_27 = arith.constant 0 : index
    %c0_28 = arith.constant 0 : index
    %70 = vector.load %arg8[%c0_26, %c0_27, %c0_28] : memref<1x128x256xbf16, #tpu.memory_space<vmem>>, vector<1x128x256xbf16>
    %71 = vector.shape_cast %70 : vector<1x128x256xbf16> to vector<128x256xbf16>
    %cst_29 = arith.constant dense<0.000000e+00> : vector<8x256xf32>
    %72 = tpu.matmul %69, %71, %cst_29 {dimension_numbers = #tpu.dot_dimension_numbers<[1], [0], [0], [1], [0, 0, 1, 1], [], []>} : vector<8x128xbf16>, vector<128x256xbf16>, vector<8x256xf32> -> vector<8x256xf32>
    %c0_30 = arith.constant 0 : index
    %c0_31 = arith.constant 0 : index
    %c0_32 = arith.constant 0 : index
    %73 = vector.load %arg7[%c0_30, %c0_31, %c0_32] : memref<1x1x256xf32, #tpu.memory_space<vmem>>, vector<1x1x256xf32>
    %74 = vector.shape_cast %73 : vector<1x1x256xf32> to vector<1x256xf32>
    %75 = vector.broadcast %74 : vector<1x256xf32> to vector<8x256xf32>
    %76 = arith.addf %72, %75 : vector<8x256xf32>
    %cst_33 = arith.constant 0.000000e+00 : f32
    %77 = vector.broadcast %cst_33 : f32 to vector<8x256xf32>
    %78 = arith.maximumf %76, %77 : vector<8x256xf32>
    %79 = arith.truncf %78 : vector<8x256xf32> to vector<8x256xbf16>
    %c0_34 = arith.constant 0 : index
    %c0_35 = arith.constant 0 : index
    %c0_36 = arith.constant 0 : index
    %80 = vector.load %arg9[%c0_34, %c0_35, %c0_36] : memref<1x256x128xbf16, #tpu.memory_space<vmem>>, vector<1x256x128xbf16>
    %81 = vector.shape_cast %80 : vector<1x256x128xbf16> to vector<256x128xbf16>
    %cst_37 = arith.constant dense<0.000000e+00> : vector<8x128xf32>
    %82 = tpu.matmul %79, %81, %cst_37 {dimension_numbers = #tpu.dot_dimension_numbers<[1], [0], [0], [1], [0, 0, 1, 1], [], []>} : vector<8x256xbf16>, vector<256x128xbf16>, vector<8x128xf32> -> vector<8x128xf32>
    %83 = vector.extract_strided_slice %4 {offsets = [4, 0], sizes = [1, 128], strides = [1, 1]} : vector<5x128xf32> to vector<1x128xf32>
    %84 = vector.broadcast %83 : vector<1x128xf32> to vector<8x128xf32>
    %85 = arith.addf %82, %84 : vector<8x128xf32>
    %86 = arith.addf %44, %85 : vector<8x128xf32>
    %87 = vector.shape_cast %86 : vector<8x128xf32> to vector<1x8x128xf32>
    %c0_38 = arith.constant 0 : index
    %c0_39 = arith.constant 0 : index
    %c0_40 = arith.constant 0 : index
    %88 = vector.load %arg14[%c0_38, %c0_39, %c0_40] : memref<1x8x128xf32, #tpu.memory_space<vmem>>, vector<1x8x128xf32>
    tpu.vector_store %arg14[%c0_38, %c0_39, %c0_40], %87 {strides = array<i32>} : memref<1x8x128xf32, #tpu.memory_space<vmem>>, vector<1x8x128xf32>,
    %c1_i32 = arith.constant 1 : i32
    %89 = arith.cmpi eq, %arg1, %c1_i32 : i32
    %90 = arith.extui %89 : i1 to i32
    %c0_i32_41 = arith.constant 0 : i32
    %91 = arith.cmpi ne, %90, %c0_i32_41 : i32
    scf.if %91 {
      %c0_42 = arith.constant 0 : index
      %c0_43 = arith.constant 0 : index
      %92 = vector.load %arg10[%c0_42, %c0_43] : memref<2x128xf32, #tpu.memory_space<vmem>>, vector<2x128xf32>
      %93 = vector.shape_cast %86 : vector<8x128xf32> to vector<1x8x128xf32>
      %94 = vector.extract_strided_slice %93 {offsets = [0, 7, 0], sizes = [1, 1, 128], strides = [1, 1, 1]} : vector<1x8x128xf32> to vector<1x1x128xf32>
      %95 = vector.shape_cast %94 : vector<1x1x128xf32> to vector<1x128xf32>
      %96 = vector.extract_strided_slice %92 {offsets = [0, 0], sizes = [1, 128], strides = [1, 1]} : vector<2x128xf32> to vector<1x128xf32>
      %97 = vector.extract_strided_slice %92 {offsets = [1, 0], sizes = [1, 128], strides = [1, 1]} : vector<2x128xf32> to vector<1x128xf32>
      %cst_44 = arith.constant dense<0.000000e+00> : vector<1xf32>
      %98 = vector.multi_reduction <add>, %95, %cst_44 [1] : vector<1x128xf32> to vector<1xf32>
      %99 = vector.shape_cast %98 : vector<1xf32> to vector<1x1xf32>
      %cst_45 = arith.constant 1.280000e+02 : f32
      %100 = vector.broadcast %cst_45 : f32 to vector<1x1xf32>
      %101 = arith.divf %99, %100 : vector<1x1xf32>
      %102 = vector.broadcast %101 : vector<1x1xf32> to vector<1x128xf32>
      %103 = arith.subf %95, %102 : vector<1x128xf32>
      %104 = arith.mulf %103, %103 : vector<1x128xf32>
      %cst_46 = arith.constant dense<0.000000e+00> : vector<1xf32>
      %105 = vector.multi_reduction <add>, %104, %cst_46 [1] : vector<1x128xf32> to vector<1xf32>
      %106 = vector.shape_cast %105 : vector<1xf32> to vector<1x1xf32>
      %cst_47 = arith.constant 1.280000e+02 : f32
      %107 = vector.broadcast %cst_47 : f32 to vector<1x1xf32>
      %108 = arith.divf %106, %107 : vector<1x1xf32>
      %109 = vector.broadcast %101 : vector<1x1xf32> to vector<1x128xf32>
      %110 = arith.subf %95, %109 : vector<1x128xf32>
      %cst_48 = arith.constant 9.99999974E-6 : f32
      %111 = vector.broadcast %cst_48 : f32 to vector<1x1xf32>
      %112 = arith.addf %108, %111 : vector<1x1xf32>
      %113 = math.rsqrt %112 : vector<1x1xf32>
      %114 = vector.broadcast %113 : vector<1x1xf32> to vector<1x128xf32>
      %115 = arith.mulf %110, %114 : vector<1x128xf32>
      %116 = arith.mulf %115, %96 : vector<1x128xf32>
      %117 = arith.addf %116, %97 : vector<1x128xf32>
      %118 = arith.truncf %117 : vector<1x128xf32> to vector<1x128xbf16>
      %c0_49 = arith.constant 0 : index
      %c0_50 = arith.constant 0 : index
      %119 = vector.load %arg11[%c0_49, %c0_50] : memref<128x128xbf16, #tpu.memory_space<vmem>>, vector<128x128xbf16>
      %cst_51 = arith.constant dense<0.000000e+00> : vector<1x128xf32>
      %120 = tpu.matmul %118, %119, %cst_51 {dimension_numbers = #tpu.dot_dimension_numbers<[1], [0], [0], [1], [0, 0, 1, 1], [], []>} : vector<1x128xbf16>, vector<128x128xbf16>, vector<1x128xf32> -> vector<1x128xf32>
      %c0_52 = arith.constant 0 : index
      %c0_53 = arith.constant 0 : index
      %121 = vector.load %arg12[%c0_52, %c0_53] : memref<1x128xf32, #tpu.memory_space<vmem>>, vector<1x128xf32>
      %122 = arith.addf %120, %121 : vector<1x128xf32>
      %123 = vector.shape_cast %122 : vector<1x128xf32> to vector<1x1x128xf32>
      %c0_54 = arith.constant 0 : index
      %c0_55 = arith.constant 0 : index
      %c0_56 = arith.constant 0 : index
      %124 = vector.load %arg13[%c0_54, %c0_55, %c0_56] : memref<1x1x128xf32, #tpu.memory_space<vmem>>, vector<1x1x128xf32>
      tpu.vector_store %arg13[%c0_54, %c0_55, %c0_56], %123 {strides = array<i32>} : memref<1x1x128xf32, #tpu.memory_space<vmem>>, vector<1x1x128xf32>,
    } else {
    }
    return
  }
  func.func @transform_0(%arg0: i32, %arg1: i32) -> (i32, i32, i32) {
    %c0_i32 = arith.constant 0 : i32
    %c0_i32_0 = arith.constant 0 : i32
    %c0_i32_1 = arith.constant 0 : i32
    return %arg0, %c0_i32, %c0_i32_0 : i32, i32, i32
  }
  func.func @transform_1(%arg0: i32, %arg1: i32) -> (i32, i32) {
    %c0_i32 = arith.constant 0 : i32
    %c0_i32_0 = arith.constant 0 : i32
    %c0_i32_1 = arith.constant 0 : i32
    return %c0_i32, %c0_i32_0 : i32, i32
  }
  func.func @transform_2(%arg0: i32, %arg1: i32) -> (i32, i32, i32) {
    %c0_i32 = arith.constant 0 : i32
    %c0_i32_0 = arith.constant 0 : i32
    %c0_i32_1 = arith.constant 0 : i32
    %c0_i32_2 = arith.constant 0 : i32
    return %c0_i32, %c0_i32_0, %c0_i32_1 : i32, i32, i32
  }
  func.func @transform_3(%arg0: i32, %arg1: i32) -> (i32, i32, i32) {
    %c0_i32 = arith.constant 0 : i32
    %c0_i32_0 = arith.constant 0 : i32
    %c0_i32_1 = arith.constant 0 : i32
    %c0_i32_2 = arith.constant 0 : i32
    return %c0_i32, %c0_i32_0, %c0_i32_1 : i32, i32, i32
  }
  func.func @transform_4(%arg0: i32, %arg1: i32) -> (i32, i32, i32) {
    %c0_i32 = arith.constant 0 : i32
    %c0_i32_0 = arith.constant 0 : i32
    %c0_i32_1 = arith.constant 0 : i32
    return %arg1, %c0_i32, %c0_i32_0 : i32, i32, i32
  }
  func.func @transform_5(%arg0: i32, %arg1: i32) -> (i32, i32, i32) {
    %c0_i32 = arith.constant 0 : i32
    %c0_i32_0 = arith.constant 0 : i32
    %c0_i32_1 = arith.constant 0 : i32
    return %arg1, %c0_i32, %c0_i32_0 : i32, i32, i32
  }
  func.func @transform_6(%arg0: i32, %arg1: i32) -> (i32, i32, i32) {
    %c0_i32 = arith.constant 0 : i32
    %c0_i32_0 = arith.constant 0 : i32
    %c0_i32_1 = arith.constant 0 : i32
    return %arg1, %c0_i32, %c0_i32_0 : i32, i32, i32
  }
  func.func @transform_7(%arg0: i32, %arg1: i32) -> (i32, i32, i32) {
    %c0_i32 = arith.constant 0 : i32
    %c0_i32_0 = arith.constant 0 : i32
    %c0_i32_1 = arith.constant 0 : i32
    return %arg1, %c0_i32, %c0_i32_0 : i32, i32, i32
  }
  func.func @transform_8(%arg0: i32, %arg1: i32) -> (i32, i32) {
    %c0_i32 = arith.constant 0 : i32
    %c0_i32_0 = arith.constant 0 : i32
    %c0_i32_1 = arith.constant 0 : i32
    return %c0_i32, %c0_i32_0 : i32, i32
  }
  func.func @transform_9(%arg0: i32, %arg1: i32) -> (i32, i32) {
    %c0_i32 = arith.constant 0 : i32
    %c0_i32_0 = arith.constant 0 : i32
    %c0_i32_1 = arith.constant 0 : i32
    return %c0_i32, %c0_i32_0 : i32, i32
  }
  func.func @transform_10(%arg0: i32, %arg1: i32) -> (i32, i32) {
    %c0_i32 = arith.constant 0 : i32
    %c0_i32_0 = arith.constant 0 : i32
    %c0_i32_1 = arith.constant 0 : i32
    return %c0_i32, %c0_i32_0 : i32, i32
  }
  func.func @transform_11(%arg0: i32, %arg1: i32) -> (i32, i32, i32) {
    %c0_i32 = arith.constant 0 : i32
    %c0_i32_0 = arith.constant 0 : i32
    %c0_i32_1 = arith.constant 0 : i32
    return %arg0, %c0_i32, %c0_i32_0 : i32, i32, i32
  }
}

</mosaic_0001>

<llo_original>
// kernel: tpu_custom_call.1
$region0: #{tpu_custom_call.1}
  #allocation0 [shape = 'u32[]', space=smem, size = 0x4, offset = 0x4, fixed_abs, tag = 'smem constant byte address 0x4 - core index']
  #allocation1 [shape = 'u32[144,128]{1,0:T(1,128)}', space=vmem, size = 0x12000, scoped, tag = 'internal scratch']
  #allocation2 [shape = 'f32[1,8,128]{2,1,0:T(8,128)}', space=vmem, size = 0x1000, scoped, tag = 'scratch operand']
  %s0 = inlined_call_operand.vmem [shape: f32[2,8,128], index: 0, kind: input, shape index: {}]
  %s1 = inlined_call_operand.hbm [shape: bf16[128,256], index: 1, kind: input, shape index: {}]
  %s2 = inlined_call_operand.vmem [shape: f32[1,8,8], index: 2, kind: input, shape index: {}]
  %s3 = inlined_call_operand.hbm [shape: f32[1,8,8], index: 3, kind: input, shape index: {}]
  %s4 = inlined_call_operand.vmem [shape: f32[2,5,128], index: 4, kind: input, shape index: {}]
  %s5 = inlined_call_operand.vmem [shape: f32[2,1,256], index: 5, kind: input, shape index: {}]
  %s6 = inlined_call_operand.hbm [shape: bf16[2,128,256], index: 6, kind: input, shape index: {}]
  %s7 = inlined_call_operand.hbm [shape: bf16[2,256,128], index: 7, kind: input, shape index: {}]
  %s8 = inlined_call_operand.vmem [shape: f32[2,128], index: 8, kind: input, shape index: {}]
  %s9 = inlined_call_operand.hbm [shape: bf16[128,128], index: 9, kind: input, shape index: {}]
  %s10 = inlined_call_operand.vmem [shape: f32[1,128], index: 10, kind: input, shape index: {}]
  %s11 = inlined_call_operand.hbm [shape: f32[2,1,128], index: 11, kind: output, shape index: {}]
  %s12 = sld [smem:[#allocation0]]
  $region105: #{tpu_custom_call.1} parent=0
    _
  %s14 = ssub.s32 1, %s12
  %s15 = scalar_select 0, %s14, %s12
  $region1: #{tpu_custom_call.1} parent=0
    #allocation3 [shape = 'u8[65536]{0}', space=vmem, size = 0x10000, scoped, tag = 'input window, operand 1, single buffered']
    #allocation4 [shape = 's32[2]{0}', space=sflag, size = 0x8, scoped, tag = 'scoped memory for tpu_custom_call.1']
    #allocation5 [shape = 's32[2]{0}', space=sflag, size = 0x8, scoped, tag = 'scoped memory for tpu_custom_call.1']
    #allocation6 [shape = 'u8[4096]{0}', space=vmem, size = 0x1000, scoped, tag = 'input window, operand 3, single buffered']
    #allocation7 [shape = 's32[1]{0}', space=sflag, size = 0x4, scoped, tag = 'scoped memory for tpu_custom_call.1']
    #allocation8 [shape = 'u8[131072]{0}', space=vmem, size = 0x20000, scoped, tag = 'input window, operand 6']
    #allocation9 [shape = 'u8[131072]{0}', space=vmem, size = 0x20000, scoped, tag = 'input window, operand 7']
    #allocation10 [shape = 'u8[32768]{0}', space=vmem, size = 0x8000, scoped, tag = 'input window, operand 9, single buffered']
    #allocation11 [shape = 'u8[1024]{0}', space=vmem, size = 0x400, scoped, tag = 'output window, operand 0']
    %16 = vsyncpa [#allocation4], 0
    %17 = vsyncpa [#allocation7], 0
    %18 = vsyncpa [#allocation5], 0
    %s19 = scalar_lea.sflag [#allocation5], 1
    %20 = vsyncpa %s19, 0
    loop: start=0, step=1, limit=6
    $region2: #{tpu_custom_call.1} parent=1 // loop_pre_header
      _
    $region3: #{tpu_custom_call.1} parent=1 // loop_header
      %s22 = sphi 0, %s26
      %p23 = scmp.ge.s32.totalorder %s22, 6
      %s29 = sphi 0, %s41
      %s30 = sphi 0, %s37
      %s31 = sphi 0, %s29
      %s32 = sphi 0, %s30
      %s33 = sphi 0, %s31
      %s34 = sphi 0, %s32
      %s44 = sphi 0, %s46
      %s47 = sphi 0, %s44
      %s48 = sphi 0, %s47
      %s64 = sphi 0, %s48
      %s68 = sphi 0, %s68
      %s70 = sphi 0, %s68
      %s71 = sphi 0, %s70
      %s85 = sphi 0, %s71
      %s89 = sphi 0, %s89
      %s91 = sphi 0, %s89
      %s92 = sphi 0, %s91
      %s106 = sphi 0, %s92
      %s110 = sphi 0, %s110
      %s112 = sphi 0, %s110
      %s113 = sphi 0, %s112
      %s127 = sphi 0, %s113
      %s133 = sphi 0, %s135
      %s136 = sphi 0, %s133
      %s137 = sphi 0, %s136
      %s153 = sphi 0, %s137
      %s159 = sphi 0, %s161
      %s162 = sphi 0, %s159
      %s163 = sphi 0, %s162
      %s179 = sphi 0, %s163
      %s185 = sphi 0, %s187
      %s188 = sphi 0, %s185
      %s189 = sphi 0, %s188
      %s205 = sphi 0, %s189
      %s211 = sphi 0, %s213
      %s214 = sphi 0, %s211
      %s215 = sphi 0, %s214
      %s231 = sphi 0, %s215
      %s235 = sphi 0, %s235
      %s237 = sphi 0, %s235
      %s238 = sphi 0, %s237
      %s252 = sphi 0, %s238
      %s256 = sphi 0, %s256
      %s258 = sphi 0, %s256
      %s259 = sphi 0, %s258
      %s273 = sphi 0, %s259
      %s277 = sphi 0, %s277
      %s279 = sphi 0, %s277
      %s280 = sphi 0, %s279
      %s294 = sphi 0, %s280
      %s300 = sphi 0, %s302
      %s303 = sphi 0, %s300
      %s304 = sphi 0, %s303
      %s320 = sphi 0, %s304
    $region4: #{tpu_custom_call.1} parent=1 // loop_header_branch
      %25 = sbr.rel (%p23) target = $region8
    $region5: #{tpu_custom_call.1} parent=1 // loop_body
      %s27 = ssub.s32 %s22, 1
      %s28 = ssub.s32 %s22, 2
      %s35 = sadd.s32 1, %s30
      %p36 = scmp.ge.s32.totalorder %s35, 2
      %s37 = scalar_select %p36, 0, %s35
      %s38 = sadd.s32 1, %s29
      %s39 = scalar_select %p36, %s38, %s29
      %p40 = scmp.ge.s32.totalorder %s39, 2
      %s41 = scalar_select %p40, 0, %s39
      %s42 = ssub.s32 %s29, %s41
      %p43 = scmp.eq.s32.totalorder %s42, 0
      %s45 = sadd.s32 %s44, 1
      %s46 = scalar_select %p43, %s44, %s45
      %p49 = pneg %p43
      %p50 = scmp.eq.s32.totalorder %s22, 3
      %p51 = por %p49, %p50
      %p52 = scmp.ne.s32.totalorder %s44, %s47
      %p53 = scmp.eq.s32.totalorder %s22, 0
      %p54 = por %p52, %p53
      %p55 = scmp.ne.s32.totalorder %s44, %s47
      %p56 = scmp.eq.s32.totalorder %s27, 3
      %p57 = por %p55, %p56
      %p58 = scmp.ne.s32.totalorder %s47, %s48
      %p59 = scmp.eq.s32.totalorder %s27, 0
      %p60 = por %p58, %p59
      %p61 = scmp.ne.s32.totalorder %s47, %s48
      %p62 = scmp.eq.s32.totalorder %s28, 3
      %p63 = por %p61, %p62
      %p65 = scmp.ne.s32.totalorder %s48, %s64
      %p66 = scmp.eq.s32.totalorder %s28, 0
      %p67 = por %p65, %p66
      %s69 = sadd.s32 %s68, 1
      %p72 = scmp.eq.s32.totalorder %s22, 3
      %p73 = scmp.ne.s32.totalorder %s68, %s70
      %p74 = scmp.eq.s32.totalorder %s22, 0
      %p75 = por %p73, %p74
      %p76 = scmp.ne.s32.totalorder %s68, %s70
      %p77 = scmp.eq.s32.totalorder %s27, 3
      %p78 = por %p76, %p77
      %p79 = scmp.ne.s32.totalorder %s70, %s71
      %p80 = scmp.eq.s32.totalorder %s27, 0
      %p81 = por %p79, %p80
      %p82 = scmp.ne.s32.totalorder %s70, %s71
      %p83 = scmp.eq.s32.totalorder %s28, 3
      %p84 = por %p82, %p83
      %p86 = scmp.ne.s32.totalorder %s71, %s85
      %p87 = scmp.eq.s32.totalorder %s28, 0
      %p88 = por %p86, %p87
      %s90 = sadd.s32 %s89, 1
      %p93 = scmp.eq.s32.totalorder %s22, 3
      %p94 = scmp.ne.s32.totalorder %s89, %s91
      %p95 = scmp.eq.s32.totalorder %s22, 0
      %p96 = por %p94, %p95
      %p97 = scmp.ne.s32.totalorder %s89, %s91
      %p98 = scmp.eq.s32.totalorder %s27, 3
      %p99 = por %p97, %p98
      %p100 = scmp.ne.s32.totalorder %s91, %s92
      %p101 = scmp.eq.s32.totalorder %s27, 0
      %p102 = por %p100, %p101
      %p103 = scmp.ne.s32.totalorder %s91, %s92
      %p104 = scmp.eq.s32.totalorder %s28, 3
      %p105 = por %p103, %p104
      %p107 = scmp.ne.s32.totalorder %s92, %s106
      %p108 = scmp.eq.s32.totalorder %s28, 0
      %p109 = por %p107, %p108
      %s111 = sadd.s32 %s110, 1
      %p114 = scmp.eq.s32.totalorder %s22, 3
      %p115 = scmp.ne.s32.totalorder %s110, %s112
      %p116 = scmp.eq.s32.totalorder %s22, 0
      %p117 = por %p115, %p116
      %p118 = scmp.ne.s32.totalorder %s110, %s112
      %p119 = scmp.eq.s32.totalorder %s27, 3
      %p120 = por %p118, %p119
      %p121 = scmp.ne.s32.totalorder %s112, %s113
      %p122 = scmp.eq.s32.totalorder %s27, 0
      %p123 = por %p121, %p122
      %p124 = scmp.ne.s32.totalorder %s112, %s113
      %p125 = scmp.eq.s32.totalorder %s28, 3
      %p126 = por %p124, %p125
      %p128 = scmp.ne.s32.totalorder %s113, %s127
      %p129 = scmp.eq.s32.totalorder %s28, 0
      %p130 = por %p128, %p129
      %s131 = ssub.s32 %s30, %s37
      %p132 = scmp.eq.s32.totalorder %s131, 0
      %s134 = sadd.s32 %s133, 1
      %s135 = scalar_select %p132, %s133, %s134
      %p138 = pneg %p132
      %p139 = scmp.eq.s32.totalorder %s22, 3
      %p140 = por %p138, %p139
      %p141 = scmp.ne.s32.totalorder %s133, %s136
      %p142 = scmp.eq.s32.totalorder %s22, 0
      %p143 = por %p141, %p142
      %p144 = scmp.ne.s32.totalorder %s133, %s136
      %p145 = scmp.eq.s32.totalorder %s27, 3
      %p146 = por %p144, %p145
      %p147 = scmp.ne.s32.totalorder %s136, %s137
      %p148 = scmp.eq.s32.totalorder %s27, 0
      %p149 = por %p147, %p148
      %p150 = scmp.ne.s32.totalorder %s136, %s137
      %p151 = scmp.eq.s32.totalorder %s28, 3
      %p152 = por %p150, %p151
      %p154 = scmp.ne.s32.totalorder %s137, %s153
      %p155 = scmp.eq.s32.totalorder %s28, 0
      %p156 = por %p154, %p155
      %s157 = ssub.s32 %s30, %s37
      %p158 = scmp.eq.s32.totalorder %s157, 0
      %s160 = sadd.s32 %s159, 1
      %s161 = scalar_select %p158, %s159, %s160
      %p164 = pneg %p158
      %p165 = scmp.eq.s32.totalorder %s22, 3
      %p166 = por %p164, %p165
      %p167 = scmp.ne.s32.totalorder %s159, %s162
      %p168 = scmp.eq.s32.totalorder %s22, 0
      %p169 = por %p167, %p168
      %p170 = scmp.ne.s32.totalorder %s159, %s162
      %p171 = scmp.eq.s32.totalorder %s27, 3
      %p172 = por %p170, %p171
      %p173 = scmp.ne.s32.totalorder %s162, %s163
      %p174 = scmp.eq.s32.totalorder %s27, 0
      %p175 = por %p173, %p174
      %p176 = scmp.ne.s32.totalorder %s162, %s163
      %p177 = scmp.eq.s32.totalorder %s28, 3
      %p178 = por %p176, %p177
      %p180 = scmp.ne.s32.totalorder %s163, %s179
      %p181 = scmp.eq.s32.totalorder %s28, 0
      %p182 = por %p180, %p181
      %s183 = ssub.s32 %s30, %s37
      %p184 = scmp.eq.s32.totalorder %s183, 0
      %s186 = sadd.s32 %s185, 1
      %s187 = scalar_select %p184, %s185, %s186
      %p190 = pneg %p184
      %p191 = scmp.eq.s32.totalorder %s22, 3
      %p192 = por %p190, %p191
      %p193 = scmp.ne.s32.totalorder %s185, %s188
      %p194 = scmp.eq.s32.totalorder %s22, 0
      %p195 = por %p193, %p194
      %p196 = scmp.ne.s32.totalorder %s185, %s188
      %p197 = scmp.eq.s32.totalorder %s27, 3
      %p198 = por %p196, %p197
      %p199 = scmp.ne.s32.totalorder %s188, %s189
      %p200 = scmp.eq.s32.totalorder %s27, 0
      %p201 = por %p199, %p200
      %p202 = scmp.ne.s32.totalorder %s188, %s189
      %p203 = scmp.eq.s32.totalorder %s28, 3
      %p204 = por %p202, %p203
      %p206 = scmp.ne.s32.totalorder %s189, %s205
      %p207 = scmp.eq.s32.totalorder %s28, 0
      %p208 = por %p206, %p207
      %s209 = ssub.s32 %s30, %s37
      %p210 = scmp.eq.s32.totalorder %s209, 0
      %s212 = sadd.s32 %s211, 1
      %s213 = scalar_select %p210, %s211, %s212
      %p216 = pneg %p210
      %p217 = scmp.eq.s32.totalorder %s22, 3
      %p218 = por %p216, %p217
      %p219 = scmp.ne.s32.totalorder %s211, %s214
      %p220 = scmp.eq.s32.totalorder %s22, 0
      %p221 = por %p219, %p220
      %p222 = scmp.ne.s32.totalorder %s211, %s214
      %p223 = scmp.eq.s32.totalorder %s27, 3
      %p224 = por %p222, %p223
      %p225 = scmp.ne.s32.totalorder %s214, %s215
      %p226 = scmp.eq.s32.totalorder %s27, 0
      %p227 = por %p225, %p226
      %p228 = scmp.ne.s32.totalorder %s214, %s215
      %p229 = scmp.eq.s32.totalorder %s28, 3
      %p230 = por %p228, %p229
      %p232 = scmp.ne.s32.totalorder %s215, %s231
      %p233 = scmp.eq.s32.totalorder %s28, 0
      %p234 = por %p232, %p233
      %s236 = sadd.s32 %s235, 1
      %p239 = scmp.eq.s32.totalorder %s22, 3
      %p240 = scmp.ne.s32.totalorder %s235, %s237
      %p241 = scmp.eq.s32.totalorder %s22, 0
      %p242 = por %p240, %p241
      %p243 = scmp.ne.s32.totalorder %s235, %s237
      %p244 = scmp.eq.s32.totalorder %s27, 3
      %p245 = por %p243, %p244
      %p246 = scmp.ne.s32.totalorder %s237, %s238
      %p247 = scmp.eq.s32.totalorder %s27, 0
      %p248 = por %p246, %p247
      %p249 = scmp.ne.s32.totalorder %s237, %s238
      %p250 = scmp.eq.s32.totalorder %s28, 3
      %p251 = por %p249, %p250
      %p253 = scmp.ne.s32.totalorder %s238, %s252
      %p254 = scmp.eq.s32.totalorder %s28, 0
      %p255 = por %p253, %p254
      %s257 = sadd.s32 %s256, 1
      %p260 = scmp.eq.s32.totalorder %s22, 3
      %p261 = scmp.ne.s32.totalorder %s256, %s258
      %p262 = scmp.eq.s32.totalorder %s22, 0
      %p263 = por %p261, %p262
      %p264 = scmp.ne.s32.totalorder %s256, %s258
      %p265 = scmp.eq.s32.totalorder %s27, 3
      %p266 = por %p264, %p265
      %p267 = scmp.ne.s32.totalorder %s258, %s259
      %p268 = scmp.eq.s32.totalorder %s27, 0
      %p269 = por %p267, %p268
      %p270 = scmp.ne.s32.totalorder %s258, %s259
      %p271 = scmp.eq.s32.totalorder %s28, 3
      %p272 = por %p270, %p271
      %p274 = scmp.ne.s32.totalorder %s259, %s273
      %p275 = scmp.eq.s32.totalorder %s28, 0
      %p276 = por %p274, %p275
      %s278 = sadd.s32 %s277, 1
      %p281 = scmp.eq.s32.totalorder %s22, 3
      %p282 = scmp.ne.s32.totalorder %s277, %s279
      %p283 = scmp.eq.s32.totalorder %s22, 0
      %p284 = por %p282, %p283
      %p285 = scmp.ne.s32.totalorder %s277, %s279
      %p286 = scmp.eq.s32.totalorder %s27, 3
      %p287 = por %p285, %p286
      %p288 = scmp.ne.s32.totalorder %s279, %s280
      %p289 = scmp.eq.s32.totalorder %s27, 0
      %p290 = por %p288, %p289
      %p291 = scmp.ne.s32.totalorder %s279, %s280
      %p292 = scmp.eq.s32.totalorder %s28, 3
      %p293 = por %p291, %p292
      %p295 = scmp.ne.s32.totalorder %s280, %s294
      %p296 = scmp.eq.s32.totalorder %s28, 0
      %p297 = por %p295, %p296
      %s298 = ssub.s32 %s29, %s41
      %p299 = scmp.eq.s32.totalorder %s298, 0
      %s301 = sadd.s32 %s300, 1
      %s302 = scalar_select %p299, %s300, %s301
      %p305 = pneg %p299
      %p306 = scmp.eq.s32.totalorder %s22, 3
      %p307 = por %p305, %p306
      %p308 = scmp.ne.s32.totalorder %s300, %s303
      %p309 = scmp.eq.s32.totalorder %s22, 0
      %p310 = por %p308, %p309
      %p311 = scmp.ne.s32.totalorder %s300, %s303
      %p312 = scmp.eq.s32.totalorder %s27, 3
      %p313 = por %p311, %p312
      %p314 = scmp.ne.s32.totalorder %s303, %s304
      %p315 = scmp.eq.s32.totalorder %s27, 0
      %p316 = por %p314, %p315
      %p317 = scmp.ne.s32.totalorder %s303, %s304
      %p318 = scmp.eq.s32.totalorder %s28, 3
      %p319 = por %p317, %p318
      %p321 = scmp.ne.s32.totalorder %s304, %s320
      %p322 = scmp.eq.s32.totalorder %s28, 0
      %p323 = por %p321, %p322
      %p324 = scmp.le.s32.totalorder 1, %s22
      %p325 = scmp.lt.s32.totalorder %s22, 5
      %p326 = pnand %p324, %p325
      %p327 = pneg %p326
      // Predicated region
      $region9: #{tpu_custom_call.1} parent=5 // pred_check
        _
      $region10: #{tpu_custom_call.1} parent=5 // pred_check_branch
        %329 = sbr.rel (%p326) target = $region12
      $region11: #{tpu_custom_call.1} parent=5 // pred_region
        %s330 = ssub.s32 %s22, 1
        // Predicated region
        $region13: #{tpu_custom_call.1} parent=11 // pred_check
          %p331 = pneg %p81
        $region14: #{tpu_custom_call.1} parent=11 // pred_check_branch
          %333 = sbr.rel (%p331) target = $region16
        $region15: #{tpu_custom_call.1} parent=11 // pred_region
          %s335 = ssub.s32 2048, 2048
          %336 = vsyncadd [#allocation4], %s335
          %s337 = sshll.u32 [#allocation3], 4
          %s338 = int_to_ptr.vmem [resolvable:$true] %s337
          %343 = dma.hbm_to_vmem [thread:$0]  %s1, 2048, %s338, [#allocation4], 128, 128, 8
        $region16: #{tpu_custom_call.1} parent=11 // pred_fallthru
          _
        // Predicated region
        $region17: #{tpu_custom_call.1} parent=11 // pred_check
          %p344 = pneg %p102
        $region18: #{tpu_custom_call.1} parent=11 // pred_check_branch
          %346 = sbr.rel (%p344) target = $region20
        $region19: #{tpu_custom_call.1} parent=11 // pred_region
          _
        $region20: #{tpu_custom_call.1} parent=11 // pred_fallthru
          _
        // Predicated region
        $region21: #{tpu_custom_call.1} parent=11 // pred_check
          %p347 = pneg %p123
        $region22: #{tpu_custom_call.1} parent=11 // pred_check_branch
          %349 = sbr.rel (%p347) target = $region24
        $region23: #{tpu_custom_call.1} parent=11 // pred_region
          %s351 = ssub.s32 128, 128
          %352 = vsyncadd [#allocation7], %s351
          %s354 = sshll.u32 [#allocation6], 4
          %s355 = int_to_ptr.vmem [resolvable:$true] %s354
          %357 = dma.hbm_to_vmem [thread:$0]  %s3, 128, %s355, [#allocation7]
        $region24: #{tpu_custom_call.1} parent=11 // pred_fallthru
          _
        // Predicated region
        $region25: #{tpu_custom_call.1} parent=11 // pred_check
          %p358 = pneg %p248
        $region26: #{tpu_custom_call.1} parent=11 // pred_check_branch
          %360 = sbr.rel (%p358) target = $region28
        $region27: #{tpu_custom_call.1} parent=11 // pred_region
          _
        $region28: #{tpu_custom_call.1} parent=11 // pred_fallthru
          _
        // Predicated region
        $region29: #{tpu_custom_call.1} parent=11 // pred_check
          %p361 = pneg %p269
        $region30: #{tpu_custom_call.1} parent=11 // pred_check_branch
          %363 = sbr.rel (%p361) target = $region32
        $region31: #{tpu_custom_call.1} parent=11 // pred_region
          %s365 = ssub.s32 1024, 1024
          %366 = vsyncadd [#allocation7], %s365
          %s367 = sshll.u32 [#allocation10], 4
          %s368 = int_to_ptr.vmem [resolvable:$true] %s367
          %373 = dma.hbm_to_vmem [thread:$0]  %s9, 1024, %s368, [#allocation7], 64, 64, 4
        $region32: #{tpu_custom_call.1} parent=11 // pred_fallthru
          _
        // Predicated region
        $region33: #{tpu_custom_call.1} parent=11 // pred_check
          %p374 = pneg %p290
        $region34: #{tpu_custom_call.1} parent=11 // pred_check_branch
          %376 = sbr.rel (%p374) target = $region36
        $region35: #{tpu_custom_call.1} parent=11 // pred_region
          _
        $region36: #{tpu_custom_call.1} parent=11 // pred_fallthru
          _
      $region12: #{tpu_custom_call.1} parent=5 // pred_fallthru
        _
      %p377 = scmp.lt.s32.totalorder %s22, 4
      // Predicated region
      $region37: #{tpu_custom_call.1} parent=5 // pred_check
        %p378 = pneg %p377
      $region38: #{tpu_custom_call.1} parent=5 // pred_check_branch
        %380 = sbr.rel (%p378) target = $region40
      $region39: #{tpu_custom_call.1} parent=5 // pred_region
        // Predicated region
        $region41: #{tpu_custom_call.1} parent=39 // pred_check
          %p381 = pneg %p54
        $region42: #{tpu_custom_call.1} parent=39 // pred_check_branch
          %383 = sbr.rel (%p381) target = $region44
        $region43: #{tpu_custom_call.1} parent=39 // pred_region
          %p384 = scmp.lt.s32.totalorder %s29, 1
          %s385 = scalar_select %p384, %s29, 1
          %s386 = smul.addr %s385, 8
          %s387 = scalar_lea.vmem %s0, %s386
        $region44: #{tpu_custom_call.1} parent=39 // pred_fallthru
          _
        // Predicated region
        $region45: #{tpu_custom_call.1} parent=39 // pred_check
          %p388 = pneg %p143
        $region46: #{tpu_custom_call.1} parent=39 // pred_check_branch
          %390 = sbr.rel (%p388) target = $region48
        $region47: #{tpu_custom_call.1} parent=39 // pred_region
          %p391 = scmp.lt.s32.totalorder %s30, 1
          %s392 = scalar_select %p391, %s30, 1
          %s393 = smul.addr %s392, 8
          %s394 = scalar_lea.vmem %s4, %s393
        $region48: #{tpu_custom_call.1} parent=39 // pred_fallthru
          _
        // Predicated region
        $region49: #{tpu_custom_call.1} parent=39 // pred_check
          %p395 = pneg %p169
        $region50: #{tpu_custom_call.1} parent=39 // pred_check_branch
          %397 = sbr.rel (%p395) target = $region52
        $region51: #{tpu_custom_call.1} parent=39 // pred_region
          %p398 = scmp.lt.s32.totalorder %s30, 1
          %s399 = scalar_select %p398, %s30, 1
          %s400 = smul.addr %s399, 2
          %s401 = scalar_lea.vmem %s5, %s400
        $region52: #{tpu_custom_call.1} parent=39 // pred_fallthru
          _
        // Predicated region
        $region53: #{tpu_custom_call.1} parent=39 // pred_check
          %p402 = pneg %p195
        $region54: #{tpu_custom_call.1} parent=39 // pred_check_branch
          %404 = sbr.rel (%p402) target = $region56
        $region55: #{tpu_custom_call.1} parent=39 // pred_region
          %s405 = sand.u32 %s22, 1
          %s406 = scalar_lea.sflag [#allocation4], %s405
          %s407 = sand.u32 %s185, 1
          %s408 = smul.addr %s407, 128
          %s409 = scalar_lea.vmem [#allocation8], %s408
          %s411 = ssub.s32 2048, 2048
          %412 = vsyncadd %s406, %s411
          %s413 = smul.addr %s30, 32
          %s414 = smul.addr %s413, 64
          %s415 = scalar_lea.hbm %s6, %s414
          %s416 = sshll.u32 %s409, 4
          %s417 = int_to_ptr.vmem [resolvable:$true] %s416
          %422 = dma.hbm_to_vmem [thread:$0]  %s415, 2048, %s417, %s406, 128, 128, 8
        $region56: #{tpu_custom_call.1} parent=39 // pred_fallthru
          _
        // Predicated region
        $region57: #{tpu_custom_call.1} parent=39 // pred_check
          %p423 = pneg %p221
        $region58: #{tpu_custom_call.1} parent=39 // pred_check_branch
          %425 = sbr.rel (%p423) target = $region60
        $region59: #{tpu_custom_call.1} parent=39 // pred_region
          %s426 = sand.u32 %s22, 1
          %s427 = scalar_lea.sflag [#allocation4], %s426
          %s428 = sand.u32 %s211, 1
          %s429 = smul.addr %s428, 128
          %s430 = scalar_lea.vmem [#allocation9], %s429
          %s432 = ssub.s32 2048, 2048
          %433 = vsyncadd %s427, %s432
          %s434 = smul.addr %s30, 32
          %s435 = smul.addr %s434, 64
          %s436 = scalar_lea.hbm %s7, %s435
          %s437 = sshll.u32 %s430, 4
          %s438 = int_to_ptr.vmem [resolvable:$true] %s437
          %443 = dma.hbm_to_vmem [thread:$0]  %s436, 2048, %s438, %s427, 64, 64, 4
        $region60: #{tpu_custom_call.1} parent=39 // pred_fallthru
          _
      $region40: #{tpu_custom_call.1} parent=5 // pred_fallthru
        _
      %p444 = scmp.le.s32.totalorder 1, %s22
      %p445 = scmp.lt.s32.totalorder %s22, 5
      %p446 = pnand %p444, %p445
      %p447 = pneg %p446
      // Predicated region
      $region61: #{tpu_custom_call.1} parent=5 // pred_check
        _
      $region62: #{tpu_custom_call.1} parent=5 // pred_check_branch
        %449 = sbr.rel (%p446) target = $region64
      $region63: #{tpu_custom_call.1} parent=5 // pred_region
        %s450 = ssub.s32 %s22, 1
        // Predicated region
        $region65: #{tpu_custom_call.1} parent=63 // pred_check
          %p451 = pneg %p81
        $region66: #{tpu_custom_call.1} parent=63 // pred_check_branch
          %453 = sbr.rel (%p451) target = $region68
        $region67: #{tpu_custom_call.1} parent=63 // pred_region
          %454 = dma.done [#allocation4], 2048
        $region68: #{tpu_custom_call.1} parent=63 // pred_fallthru
          _
        // Predicated region
        $region69: #{tpu_custom_call.1} parent=63 // pred_check
          %p455 = pneg %p123
        $region70: #{tpu_custom_call.1} parent=63 // pred_check_branch
          %457 = sbr.rel (%p455) target = $region72
        $region71: #{tpu_custom_call.1} parent=63 // pred_region
          %458 = dma.done [#allocation7], 128
        $region72: #{tpu_custom_call.1} parent=63 // pred_fallthru
          _
        %s459 = sand.u32 %s27, 1
        %s460 = scalar_lea.sflag [#allocation4], %s459
        %s461 = sand.u32 %s188, 1
        %s462 = smul.addr %s461, 128
        %s463 = scalar_lea.vmem [#allocation8], %s462
        // Predicated region
        $region73: #{tpu_custom_call.1} parent=63 // pred_check
          %p464 = pneg %p201
        $region74: #{tpu_custom_call.1} parent=63 // pred_check_branch
          %466 = sbr.rel (%p464) target = $region76
        $region75: #{tpu_custom_call.1} parent=63 // pred_region
          %467 = dma.done %s460, 2048
        $region76: #{tpu_custom_call.1} parent=63 // pred_fallthru
          _
        %s468 = sand.u32 %s27, 1
        %s469 = scalar_lea.sflag [#allocation4], %s468
        %s470 = sand.u32 %s214, 1
        %s471 = smul.addr %s470, 128
        %s472 = scalar_lea.vmem [#allocation9], %s471
        // Predicated region
        $region77: #{tpu_custom_call.1} parent=63 // pred_check
          %p473 = pneg %p227
        $region78: #{tpu_custom_call.1} parent=63 // pred_check_branch
          %475 = sbr.rel (%p473) target = $region80
        $region79: #{tpu_custom_call.1} parent=63 // pred_region
          %476 = dma.done %s469, 2048
        $region80: #{tpu_custom_call.1} parent=63 // pred_fallthru
          _
        // Predicated region
        $region81: #{tpu_custom_call.1} parent=63 // pred_check
          %p477 = pneg %p269
        $region82: #{tpu_custom_call.1} parent=63 // pred_check_branch
          %479 = sbr.rel (%p477) target = $region84
        $region83: #{tpu_custom_call.1} parent=63 // pred_region
          %480 = dma.done [#allocation7], 1024
        $region84: #{tpu_custom_call.1} parent=63 // pred_fallthru
          _
        %p481 = scmp.lt.s32.totalorder %s31, 1
        %s482 = scalar_select %p481, %s31, 1
        %s483 = smul.addr %s482, 8
        %s484 = scalar_lea.vmem %s0, %s483
        %p485 = pneg %p60
        %p486 = pneg %p57
        %p487 = pneg %p81
        %p488 = pneg %p78
        %p489 = pneg %p102
        %p490 = pneg %p99
        %p491 = pneg %p123
        %p492 = pneg %p120
        %p493 = scmp.lt.s32.totalorder %s32, 1
        %s494 = scalar_select %p493, %s32, 1
        %s495 = smul.addr %s494, 8
        %s496 = scalar_lea.vmem %s4, %s495
        %p497 = pneg %p149
        %p498 = pneg %p146
        %p499 = scmp.lt.s32.totalorder %s32, 1
        %s500 = scalar_select %p499, %s32, 1
        %s501 = smul.addr %s500, 2
        %s502 = scalar_lea.vmem %s5, %s501
        %p503 = pneg %p175
        %p504 = pneg %p172
        %s505 = sand.u32 %s27, 1
        %s506 = scalar_lea.sflag [#allocation4], %s505
        %s507 = sand.u32 %s188, 1
        %s508 = smul.addr %s507, 128
        %s509 = scalar_lea.vmem [#allocation8], %s508
        %p510 = pneg %p201
        %p511 = pneg %p198
        %s512 = sand.u32 %s27, 1
        %s513 = scalar_lea.sflag [#allocation4], %s512
        %s514 = sand.u32 %s214, 1
        %s515 = smul.addr %s514, 128
        %s516 = scalar_lea.vmem [#allocation9], %s515
        %p517 = pneg %p227
        %p518 = pneg %p224
        %p519 = pneg %p248
        %p520 = pneg %p245
        %p521 = pneg %p269
        %p522 = pneg %p266
        %p523 = pneg %p290
        %p524 = pneg %p287
        %p525 = pneg %p316
        %p526 = pneg %p313
        %s527 = sand.u32 %s303, 1
        %s528 = scalar_lea.sflag [#allocation5], %s527
        %s529 = sand.u32 %s303, 1
        %s530 = scalar_lea.vmem [#allocation11], %s529
        %p531 = scmp.lt.s32.totalorder %s31, 1
        %s532 = scalar_select %p531, %s31, 1
        %s533 = smul.addr %s532, 8
        %s534 = scalar_lea.vmem %s0, %s533
        %p535 = scmp.lt.s32.totalorder %s32, 1
        %s536 = scalar_select %p535, %s32, 1
        %s537 = smul.addr %s536, 8
        %s538 = scalar_lea.vmem %s4, %s537
        %p539 = scmp.lt.s32.totalorder %s32, 1
        %s540 = scalar_select %p539, %s32, 1
        %s541 = smul.addr %s540, 2
        %s542 = scalar_lea.vmem %s5, %s541
        %p544 = scmp.eq.s32.totalorder %s32, 0
        // Predicated region
        $region85: #{tpu_custom_call.1} parent=63 // pred_check
          %p545 = pneg %p544
        $region86: #{tpu_custom_call.1} parent=63 // pred_check_branch
          %547 = sbr.rel (%p545) target = $region88
        $region87: #{tpu_custom_call.1} parent=63 // pred_region
          %v548 = vld [vmem:[%s534] sm:$0xff]
          %549 = vst [vmem:[#allocation2] sm:$0xff] %v548
        $region88: #{tpu_custom_call.1} parent=63 // pred_fallthru
          _
        %v550 = vld [vmem:[%s538] sm:$0x1f]
        %v551 = vld [vmem:[#allocation2] sm:$0xff]
        %552 = vadd.xlane.f32.xlu0 %v551
        %v553 = vpop.xlane.xlu0 %552
        %v554 = vrcp.pop 128.0
        %v555 = vmul.f32 %v553, %v554
        %v556 = vsub.f32 %v551, %v555
        %v557 = vmul.f32 %v556, %v556
        %558 = vadd.xlane.f32.xlu0 %v557
        %v559 = vpop.xlane.xlu0 %558
        %v560 = vmul.f32 %v559, %v554
        %v561 = vadd.f32 %v560, 1e-05
        %v562 = vrsqrt.pop %v561
        %v563 = vmul.f32 %v556, %v562
        %v564 = vlaneseq
        %v565 = vshrl.u32 %v564, 7
        %v566 = vsub.s32 0, %v565
        %v567 = vrot.slane %v550, %v566
        %v568 = vmul.f32 %v563, %v567
        %v569 = vlaneseq
        %v570 = vshrl.u32 %v569, 7
        %v571 = vsub.s32 1, %v570
        %v572 = vrot.slane %v550, %v571
        %v573 = vadd.f32 %v568, %v572
        %v574 = vpack.c.bf16 %v573, %v573
        %v575 = vld [vmem:[#allocation3] sm:$0xff]
        %v576 = vld [vmem:[#allocation3 + $0x8] sm:$0xff]
        %v577 = vld [vmem:[#allocation3 + $0x10] sm:$0xff]
        %v578 = vld [vmem:[#allocation3 + $0x18] sm:$0xff]
        %v579 = vld [vmem:[#allocation3 + $0x20] sm:$0xff]
        %v580 = vld [vmem:[#allocation3 + $0x28] sm:$0xff]
        %v581 = vld [vmem:[#allocation3 + $0x30] sm:$0xff]
        %v582 = vld [vmem:[#allocation3 + $0x38] sm:$0xff]
        %v583 = vld [vmem:[#allocation3 + $0x40] sm:$0xff]
        %v584 = vld [vmem:[#allocation3 + $0x48] sm:$0xff]
        %v585 = vld [vmem:[#allocation3 + $0x50] sm:$0xff]
        %v586 = vld [vmem:[#allocation3 + $0x58] sm:$0xff]
        %v587 = vld [vmem:[#allocation3 + $0x60] sm:$0xff]
        %v588 = vld [vmem:[#allocation3 + $0x68] sm:$0xff]
        %v589 = vld [vmem:[#allocation3 + $0x70] sm:$0xff]
        %v590 = vld [vmem:[#allocation3 + $0x78] sm:$0xff]
        %v607 = vunpack.c.l.b16 %v575
        %v608 = vunpack.c.h.b16 %v575
        %v609 = vunpack.c.l.b16 %v576
        %v610 = vunpack.c.h.b16 %v576
        %v611 = vunpack.c.l.b16 %v577
        %v612 = vunpack.c.h.b16 %v577
        %v613 = vunpack.c.l.b16 %v578
        %v614 = vunpack.c.h.b16 %v578
        %v615 = vunpack.c.l.b16 %v579
        %v616 = vunpack.c.h.b16 %v579
        %v617 = vunpack.c.l.b16 %v580
        %v618 = vunpack.c.h.b16 %v580
        %v619 = vunpack.c.l.b16 %v581
        %v620 = vunpack.c.h.b16 %v581
        %v621 = vunpack.c.l.b16 %v582
        %v622 = vunpack.c.h.b16 %v582
        %v623 = vunpack.c.l.b16 %v583
        %v624 = vunpack.c.h.b16 %v583
        %v625 = vunpack.c.l.b16 %v584
        %v626 = vunpack.c.h.b16 %v584
        %v627 = vunpack.c.l.b16 %v585
        %v628 = vunpack.c.h.b16 %v585
        %v629 = vunpack.c.l.b16 %v586
        %v630 = vunpack.c.h.b16 %v586
        %v631 = vunpack.c.l.b16 %v587
        %v632 = vunpack.c.h.b16 %v587
        %v633 = vunpack.c.l.b16 %v588
        %v634 = vunpack.c.h.b16 %v588
        %v635 = vunpack.c.l.b16 %v589
        %v636 = vunpack.c.h.b16 %v589
        %v637 = vunpack.c.l.b16 %v590
        %v638 = vunpack.c.h.b16 %v590
        %v639 = vpack.c.b16 %v609, %v607
        %v640 = vpack.c.b16 %v610, %v608
        %v641 = vpack.c.b16 %v613, %v611
        %v642 = vpack.c.b16 %v614, %v612
        %v643 = vpack.c.b16 %v617, %v615
        %v644 = vpack.c.b16 %v618, %v616
        %v645 = vpack.c.b16 %v621, %v619
        %v646 = vpack.c.b16 %v622, %v620
        %v647 = vpack.c.b16 %v625, %v623
        %v648 = vpack.c.b16 %v626, %v624
        %v649 = vpack.c.b16 %v629, %v627
        %v650 = vpack.c.b16 %v630, %v628
        %v651 = vpack.c.b16 %v633, %v631
        %v652 = vpack.c.b16 %v634, %v632
        %v653 = vpack.c.b16 %v637, %v635
        %v654 = vpack.c.b16 %v638, %v636
        %671 = vmatprep.subr.bf16.mxu0 %v654
        %672 = vmatpush1.bf16.msra.mxu0 %v653
        %673 = vmatprep.subr.bf16.mxu0 %v652
        %674 = vmatpush1.bf16.msra.mxu0 %v651
        %675 = vmatprep.subr.bf16.mxu0 %v650
        %676 = vmatpush1.bf16.msra.mxu0 %v649
        %677 = vmatprep.subr.bf16.mxu0 %v648
        %678 = vmatpush1.bf16.msra.mxu0 %v647
        %679 = vmatprep.subr.bf16.mxu0 %v646
        %680 = vmatpush1.bf16.msra.mxu0 %v645
        %681 = vmatprep.subr.bf16.mxu0 %v644
        %682 = vmatpush1.bf16.msra.mxu0 %v643
        %683 = vmatprep.subr.bf16.mxu0 %v642
        %684 = vmatpush1.bf16.msra.mxu0 %v641
        %685 = vmatprep.subr.bf16.mxu0 %v640
        %686 = vmatpush1.bf16.msra.mxu0 %v639
        %687 = vmatprep.subr.bf16.mxu0 0
        %688 = vmatpush2.bf16.msra.mxu0 0
        %689 = vmatprep.subr.bf16.mxu0 0
        %690 = vmatpush2.bf16.msra.mxu0 0
        %691 = vmatprep.subr.bf16.mxu0 0
        %692 = vmatpush2.bf16.msra.mxu0 0
        %693 = vmatprep.subr.bf16.mxu0 0
        %694 = vmatpush2.bf16.msra.mxu0 0
        %695 = vmatprep.subr.bf16.mxu0 0
        %696 = vmatpush2.bf16.msra.mxu0 0
        %697 = vmatprep.subr.bf16.mxu0 0
        %698 = vmatpush2.bf16.msra.mxu0 0
        %699 = vmatprep.subr.bf16.mxu0 0
        %700 = vmatpush2.bf16.msra.mxu0 0
        %701 = vmatprep.subr.bf16.mxu0 0
        %702 = vmatpush2.bf16.msra.mxu0 0
        %703 = vmatprep.mubr.bf16.mxu0 0
        %704 = vmatmul.mubr.bf16.gmra.mxu0 %v574
        %v705 = vpop.f32.mrf.mxu0
        %v706 = vadd.f32 0.0, %v705
        %v707 = vpop.f32.mrf.mxu0
        %v708 = vadd.f32 0.0, %v707
        %v709 = vpop.f32.mrf.mxu0
        %v710 = vpop.f32.mrf.mxu0
        %711 = vdwg.mxu0
        %v712 = vld [vmem:[%s2] sm:$0xff]
        %vm713 = vcmask 64512
        %v715 = vsel %vm713, %v712, 0
        %717 = vmatprep.subr.mxu0 0.0
        %718 = vmatpush1.msra.mxu0 0.0
        %719 = vmatprep.subr.mxu0 0.0
        %720 = vmatpush1.msra.mxu0 0.0
        %721 = vmatprep.subr.mxu0 0.0
        %722 = vmatpush1.msra.mxu0 0.0
        %723 = vmatprep.subr.mxu0 0.0
        %724 = vmatpush1.msra.mxu0 0.0
        %725 = vmatprep.subr.mxu0 0.0
        %726 = vmatpush1.msra.mxu0 0.0
        %727 = vmatprep.subr.mxu0 0.0
        %728 = vmatpush1.msra.mxu0 0.0
        %729 = vmatprep.subr.mxu0 0.0
        %730 = vmatpush1.msra.mxu0 0.0
        %731 = vmatprep.subr.mxu0 0.0
        %732 = vmatpush1.msra.mxu0 0.0
        %733 = vmatprep.subr.mxu0 0.0
        %734 = vmatpush1.msra.mxu0 0.0
        %735 = vmatprep.subr.mxu0 0.0
        %736 = vmatpush1.msra.mxu0 0.0
        %737 = vmatprep.subr.mxu0 0.0
        %738 = vmatpush1.msra.mxu0 0.0
        %739 = vmatprep.subr.mxu0 0.0
        %740 = vmatpush1.msra.mxu0 0.0
        %741 = vmatprep.subr.mxu0 0.0
        %742 = vmatpush1.msra.mxu0 0.0
        %743 = vmatprep.subr.mxu0 0.0
        %744 = vmatpush1.msra.mxu0 0.0
        %745 = vmatprep.subr.mxu0 0.0
        %746 = vmatpush1.msra.mxu0 0.0
        %747 = vmatprep.subr.mxu0 0.0
        %748 = vmatpush1.msra.mxu0 %v706
        %749 = vmatprep.subr.mxu0 0.0
        %750 = vmatpush2.msra.mxu0 0.0
        %751 = vmatprep.subr.mxu0 0.0
        %752 = vmatpush2.msra.mxu0 0.0
        %753 = vmatprep.subr.mxu0 0.0
        %754 = vmatpush2.msra.mxu0 0.0
        %755 = vmatprep.subr.mxu0 0.0
        %756 = vmatpush2.msra.mxu0 0.0
        %757 = vmatprep.subr.mxu0 0.0
        %758 = vmatpush2.msra.mxu0 0.0
        %759 = vmatprep.subr.mxu0 0.0
        %760 = vmatpush2.msra.mxu0 0.0
        %761 = vmatprep.subr.mxu0 0.0
        %762 = vmatpush2.msra.mxu0 0.0
        %763 = vmatprep.subr.mxu0 0.0
        %764 = vmatpush2.msra.mxu0 0.0
        %765 = vmatprep.subr.mxu0 0.0
        %766 = vmatpush2.msra.mxu0 0.0
        %767 = vmatprep.subr.mxu0 0.0
        %768 = vmatpush2.msra.mxu0 0.0
        %769 = vmatprep.subr.mxu0 0.0
        %770 = vmatpush2.msra.mxu0 0.0
        %771 = vmatprep.subr.mxu0 0.0
        %772 = vmatpush2.msra.mxu0 0.0
        %773 = vmatprep.subr.mxu0 0.0
        %774 = vmatpush2.msra.mxu0 0.0
        %775 = vmatprep.subr.mxu0 0.0
        %776 = vmatpush2.msra.mxu0 0.0
        %777 = vmatprep.subr.mxu0 0.0
        %778 = vmatpush2.msra.mxu0 0.0
        %779 = vmatprep.subr.mxu0 0.0
        %780 = vmatpush2.msra.mxu0 0.0
        %781 = vmatprep.mubr.f32.mxu0 0.0
        %782 = vmatmul.mubr.f32.gmra.mxu0 %v715
        %v783 = vpop.f32.mrf.mxu0
        %v784 = vadd.f32 0.0, %v783
        %v785 = vpop.f32.mrf.mxu0
        %786 = vdwg.mxu0
        %v787 = vld [vmem:[#allocation6] sm:$0xff]
        %v789 = vsel %vm713, %v787, 0
        %791 = vmatprep.subr.mxu0 0.0
        %792 = vmatpush1.msra.mxu0 0.0
        %793 = vmatprep.subr.mxu0 0.0
        %794 = vmatpush1.msra.mxu0 0.0
        %795 = vmatprep.subr.mxu0 0.0
        %796 = vmatpush1.msra.mxu0 0.0
        %797 = vmatprep.subr.mxu0 0.0
        %798 = vmatpush1.msra.mxu0 0.0
        %799 = vmatprep.subr.mxu0 0.0
        %800 = vmatpush1.msra.mxu0 0.0
        %801 = vmatprep.subr.mxu0 0.0
        %802 = vmatpush1.msra.mxu0 0.0
        %803 = vmatprep.subr.mxu0 0.0
        %804 = vmatpush1.msra.mxu0 0.0
        %805 = vmatprep.subr.mxu0 0.0
        %806 = vmatpush1.msra.mxu0 0.0
        %807 = vmatprep.subr.mxu0 0.0
        %808 = vmatpush1.msra.mxu0 0.0
        %809 = vmatprep.subr.mxu0 0.0
        %810 = vmatpush1.msra.mxu0 0.0
        %811 = vmatprep.subr.mxu0 0.0
        %812 = vmatpush1.msra.mxu0 0.0
        %813 = vmatprep.subr.mxu0 0.0
        %814 = vmatpush1.msra.mxu0 0.0
        %815 = vmatprep.subr.mxu0 0.0
        %816 = vmatpush1.msra.mxu0 0.0
        %817 = vmatprep.subr.mxu0 0.0
        %818 = vmatpush1.msra.mxu0 0.0
        %819 = vmatprep.subr.mxu0 0.0
        %820 = vmatpush1.msra.mxu0 0.0
        %821 = vmatprep.subr.mxu0 0.0
        %822 = vmatpush1.msra.mxu0 %v708
        %823 = vmatprep.subr.mxu0 0.0
        %824 = vmatpush2.msra.mxu0 0.0
        %825 = vmatprep.subr.mxu0 0.0
        %826 = vmatpush2.msra.mxu0 0.0
        %827 = vmatprep.subr.mxu0 0.0
        %828 = vmatpush2.msra.mxu0 0.0
        %829 = vmatprep.subr.mxu0 0.0
        %830 = vmatpush2.msra.mxu0 0.0
        %831 = vmatprep.subr.mxu0 0.0
        %832 = vmatpush2.msra.mxu0 0.0
        %833 = vmatprep.subr.mxu0 0.0
        %834 = vmatpush2.msra.mxu0 0.0
        %835 = vmatprep.subr.mxu0 0.0
        %836 = vmatpush2.msra.mxu0 0.0
        %837 = vmatprep.subr.mxu0 0.0
        %838 = vmatpush2.msra.mxu0 0.0
        %839 = vmatprep.subr.mxu0 0.0
        %840 = vmatpush2.msra.mxu0 0.0
        %841 = vmatprep.subr.mxu0 0.0
        %842 = vmatpush2.msra.mxu0 0.0
        %843 = vmatprep.subr.mxu0 0.0
        %844 = vmatpush2.msra.mxu0 0.0
        %845 = vmatprep.subr.mxu0 0.0
        %846 = vmatpush2.msra.mxu0 0.0
        %847 = vmatprep.subr.mxu0 0.0
        %848 = vmatpush2.msra.mxu0 0.0
        %849 = vmatprep.subr.mxu0 0.0
        %850 = vmatpush2.msra.mxu0 0.0
        %851 = vmatprep.subr.mxu0 0.0
        %852 = vmatpush2.msra.mxu0 0.0
        %853 = vmatprep.subr.mxu0 0.0
        %854 = vmatpush2.msra.mxu0 0.0
        %855 = vmatprep.mubr.f32.mxu0 0.0
        %856 = vmatmul.mubr.f32.gmra.mxu0 %v789
        %v857 = vpop.f32.mrf.mxu0
        %v858 = vadd.f32 0.0, %v857
        %v859 = vpop.f32.mrf.mxu0
        %860 = vdwg.mxu0
        %v861 = vsub.f32 %v784, %v858
        %v862 = vadd.f32 %v551, %v861
        %863 = vadd.xlane.f32.xlu0 %v862
        %v864 = vpop.xlane.xlu0 %863
        %v865 = vmul.f32 %v864, %v554
        %v866 = vsub.f32 %v862, %v865
        %v867 = vmul.f32 %v866, %v866
        %868 = vadd.xlane.f32.xlu0 %v867
        %v869 = vpop.xlane.xlu0 %868
        %v870 = vmul.f32 %v869, %v554
        %v871 = vadd.f32 %v870, 1e-05
        %v872 = vrsqrt.pop %v871
        %v873 = vmul.f32 %v866, %v872
        %v874 = vlaneseq
        %v875 = vshrl.u32 %v874, 7
        %v876 = vsub.s32 2, %v875
        %v877 = vrot.slane %v550, %v876
        %v878 = vmul.f32 %v873, %v877
        %v879 = vlaneseq
        %v880 = vshrl.u32 %v879, 7
        %v881 = vsub.s32 3, %v880
        %v882 = vrot.slane %v550, %v881
        %v883 = vadd.f32 %v878, %v882
        %v884 = vpack.c.bf16 %v883, %v883
        %v885 = vld [vmem:[%s463] sm:$0xff]
        %v886 = vld [vmem:[%s463 + $0x8] sm:$0xff]
        %v887 = vld [vmem:[%s463 + $0x10] sm:$0xff]
        %v888 = vld [vmem:[%s463 + $0x18] sm:$0xff]
        %v889 = vld [vmem:[%s463 + $0x20] sm:$0xff]
        %v890 = vld [vmem:[%s463 + $0x28] sm:$0xff]
        %v891 = vld [vmem:[%s463 + $0x30] sm:$0xff]
        %v892 = vld [vmem:[%s463 + $0x38] sm:$0xff]
        %v893 = vld [vmem:[%s463 + $0x40] sm:$0xff]
        %v894 = vld [vmem:[%s463 + $0x48] sm:$0xff]
        %v895 = vld [vmem:[%s463 + $0x50] sm:$0xff]
        %v896 = vld [vmem:[%s463 + $0x58] sm:$0xff]
        %v897 = vld [vmem:[%s463 + $0x60] sm:$0xff]
        %v898 = vld [vmem:[%s463 + $0x68] sm:$0xff]
        %v899 = vld [vmem:[%s463 + $0x70] sm:$0xff]
        %v900 = vld [vmem:[%s463 + $0x78] sm:$0xff]
        %v901 = vld [vmem:[%s542] sm:$0x3]
        %v903 = vlaneseq
        %v904 = vshrl.u32 %v903, 7
        %v905 = vsub.s32 0, %v904
        %v906 = vrot.slane %v901, %v905
        %v907 = vlaneseq
        %v908 = vshrl.u32 %v907, 7
        %v909 = vsub.s32 1, %v908
        %v910 = vrot.slane %v901, %v909
        %v929 = vunpack.c.l.b16 %v885
        %v930 = vunpack.c.h.b16 %v885
        %v931 = vunpack.c.l.b16 %v886
        %v932 = vunpack.c.h.b16 %v886
        %v933 = vunpack.c.l.b16 %v887
        %v934 = vunpack.c.h.b16 %v887
        %v935 = vunpack.c.l.b16 %v888
        %v936 = vunpack.c.h.b16 %v888
        %v937 = vunpack.c.l.b16 %v889
        %v938 = vunpack.c.h.b16 %v889
        %v939 = vunpack.c.l.b16 %v890
        %v940 = vunpack.c.h.b16 %v890
        %v941 = vunpack.c.l.b16 %v891
        %v942 = vunpack.c.h.b16 %v891
        %v943 = vunpack.c.l.b16 %v892
        %v944 = vunpack.c.h.b16 %v892
        %v945 = vunpack.c.l.b16 %v893
        %v946 = vunpack.c.h.b16 %v893
        %v947 = vunpack.c.l.b16 %v894
        %v948 = vunpack.c.h.b16 %v894
        %v949 = vunpack.c.l.b16 %v895
        %v950 = vunpack.c.h.b16 %v895
        %v951 = vunpack.c.l.b16 %v896
        %v952 = vunpack.c.h.b16 %v896
        %v953 = vunpack.c.l.b16 %v897
        %v954 = vunpack.c.h.b16 %v897
        %v955 = vunpack.c.l.b16 %v898
        %v956 = vunpack.c.h.b16 %v898
        %v957 = vunpack.c.l.b16 %v899
        %v958 = vunpack.c.h.b16 %v899
        %v959 = vunpack.c.l.b16 %v900
        %v960 = vunpack.c.h.b16 %v900
        %v961 = vpack.c.b16 %v931, %v929
        %v962 = vpack.c.b16 %v932, %v930
        %v963 = vpack.c.b16 %v935, %v933
        %v964 = vpack.c.b16 %v936, %v934
        %v965 = vpack.c.b16 %v939, %v937
        %v966 = vpack.c.b16 %v940, %v938
        %v967 = vpack.c.b16 %v943, %v941
        %v968 = vpack.c.b16 %v944, %v942
        %v969 = vpack.c.b16 %v947, %v945
        %v970 = vpack.c.b16 %v948, %v946
        %v971 = vpack.c.b16 %v951, %v949
        %v972 = vpack.c.b16 %v952, %v950
        %v973 = vpack.c.b16 %v955, %v953
        %v974 = vpack.c.b16 %v956, %v954
        %v975 = vpack.c.b16 %v959, %v957
        %v976 = vpack.c.b16 %v960, %v958
        %993 = vmatprep.subr.bf16.mxu0 %v976
        %994 = vmatpush1.bf16.msra.mxu0 %v975
        %995 = vmatprep.subr.bf16.mxu0 %v974
        %996 = vmatpush1.bf16.msra.mxu0 %v973
        %997 = vmatprep.subr.bf16.mxu0 %v972
        %998 = vmatpush1.bf16.msra.mxu0 %v971
        %999 = vmatprep.subr.bf16.mxu0 %v970
        %1000 = vmatpush1.bf16.msra.mxu0 %v969
        %1001 = vmatprep.subr.bf16.mxu0 %v968
        %1002 = vmatpush1.bf16.msra.mxu0 %v967
        %1003 = vmatprep.subr.bf16.mxu0 %v966
        %1004 = vmatpush1.bf16.msra.mxu0 %v965
        %1005 = vmatprep.subr.bf16.mxu0 %v964
        %1006 = vmatpush1.bf16.msra.mxu0 %v963
        %1007 = vmatprep.subr.bf16.mxu0 %v962
        %1008 = vmatpush1.bf16.msra.mxu0 %v961
        %1009 = vmatprep.subr.bf16.mxu0 0
        %1010 = vmatpush2.bf16.msra.mxu0 0
        %1011 = vmatprep.subr.bf16.mxu0 0
        %1012 = vmatpush2.bf16.msra.mxu0 0
        %1013 = vmatprep.subr.bf16.mxu0 0
        %1014 = vmatpush2.bf16.msra.mxu0 0
        %1015 = vmatprep.subr.bf16.mxu0 0
        %1016 = vmatpush2.bf16.msra.mxu0 0
        %1017 = vmatprep.subr.bf16.mxu0 0
        %1018 = vmatpush2.bf16.msra.mxu0 0
        %1019 = vmatprep.subr.bf16.mxu0 0
        %1020 = vmatpush2.bf16.msra.mxu0 0
        %1021 = vmatprep.subr.bf16.mxu0 0
        %1022 = vmatpush2.bf16.msra.mxu0 0
        %1023 = vmatprep.subr.bf16.mxu0 0
        %1024 = vmatpush2.bf16.msra.mxu0 0
        %1025 = vmatprep.mubr.bf16.mxu0 0
        %1026 = vmatmul.mubr.bf16.gmra.mxu0 %v884
        %v1027 = vpop.f32.mrf.mxu0
        %v1028 = vadd.f32 %v906, %v1027
        %v1029 = vpop.f32.mrf.mxu0
        %v1030 = vadd.f32 %v910, %v1029
        %v1031 = vpop.f32.mrf.mxu0
        %v1032 = vpop.f32.mrf.mxu0
        %1033 = vdwg.mxu0
        %v1034 = vmax.f32 %v1028, 0.0
        %v1035 = vmax.f32 %v1030, 0.0
        %v1036 = vpack.c.bf16 %v1034, %v1034
        %v1037 = vpack.c.bf16 %v1035, %v1035
        %v1038 = vld [vmem:[%s472] sm:$0xf]
        %v1039 = vld [vmem:[%s472 + $0x4] sm:$0xf]
        %v1040 = vld [vmem:[%s472 + $0x8] sm:$0xf]
        %v1041 = vld [vmem:[%s472 + $0xc] sm:$0xf]
        %v1042 = vld [vmem:[%s472 + $0x10] sm:$0xf]
        %v1043 = vld [vmem:[%s472 + $0x14] sm:$0xf]
        %v1044 = vld [vmem:[%s472 + $0x18] sm:$0xf]
        %v1045 = vld [vmem:[%s472 + $0x1c] sm:$0xf]
        %v1046 = vld [vmem:[%s472 + $0x20] sm:$0xf]
        %v1047 = vld [vmem:[%s472 + $0x24] sm:$0xf]
        %v1048 = vld [vmem:[%s472 + $0x28] sm:$0xf]
        %v1049 = vld [vmem:[%s472 + $0x2c] sm:$0xf]
        %v1050 = vld [vmem:[%s472 + $0x30] sm:$0xf]
        %v1051 = vld [vmem:[%s472 + $0x34] sm:$0xf]
        %v1052 = vld [vmem:[%s472 + $0x38] sm:$0xf]
        %v1053 = vld [vmem:[%s472 + $0x3c] sm:$0xf]
        %v1054 = vld [vmem:[%s472 + $0x40] sm:$0xf]
        %v1055 = vld [vmem:[%s472 + $0x44] sm:$0xf]
        %v1056 = vld [vmem:[%s472 + $0x48] sm:$0xf]
        %v1057 = vld [vmem:[%s472 + $0x4c] sm:$0xf]
        %v1058 = vld [vmem:[%s472 + $0x50] sm:$0xf]
        %v1059 = vld [vmem:[%s472 + $0x54] sm:$0xf]
        %v1060 = vld [vmem:[%s472 + $0x58] sm:$0xf]
        %v1061 = vld [vmem:[%s472 + $0x5c] sm:$0xf]
        %v1062 = vld [vmem:[%s472 + $0x60] sm:$0xf]
        %v1063 = vld [vmem:[%s472 + $0x64] sm:$0xf]
        %v1064 = vld [vmem:[%s472 + $0x68] sm:$0xf]
        %v1065 = vld [vmem:[%s472 + $0x6c] sm:$0xf]
        %v1066 = vld [vmem:[%s472 + $0x70] sm:$0xf]
        %v1067 = vld [vmem:[%s472 + $0x74] sm:$0xf]
        %v1068 = vld [vmem:[%s472 + $0x78] sm:$0xf]
        %v1069 = vld [vmem:[%s472 + $0x7c] sm:$0xf]
        %v1070 = vlaneseq
        %v1071 = vshrl.u32 %v1070, 7
        %v1072 = vsub.s32 4, %v1071
        %v1073 = vrot.slane %v550, %v1072
        %v1106 = vunpack.c.l.b16 %v1038
        %v1107 = vunpack.c.l.b16 %v1039
        %v1108 = vunpack.c.l.b16 %v1040
        %v1109 = vunpack.c.l.b16 %v1041
        %v1110 = vunpack.c.l.b16 %v1042
        %v1111 = vunpack.c.l.b16 %v1043
        %v1112 = vunpack.c.l.b16 %v1044
        %v1113 = vunpack.c.l.b16 %v1045
        %v1114 = vunpack.c.l.b16 %v1046
        %v1115 = vunpack.c.l.b16 %v1047
        %v1116 = vunpack.c.l.b16 %v1048
        %v1117 = vunpack.c.l.b16 %v1049
        %v1118 = vunpack.c.l.b16 %v1050
        %v1119 = vunpack.c.l.b16 %v1051
        %v1120 = vunpack.c.l.b16 %v1052
        %v1121 = vunpack.c.l.b16 %v1053
        %v1122 = vunpack.c.l.b16 %v1054
        %v1123 = vunpack.c.l.b16 %v1055
        %v1124 = vunpack.c.l.b16 %v1056
        %v1125 = vunpack.c.l.b16 %v1057
        %v1126 = vunpack.c.l.b16 %v1058
        %v1127 = vunpack.c.l.b16 %v1059
        %v1128 = vunpack.c.l.b16 %v1060
        %v1129 = vunpack.c.l.b16 %v1061
        %v1130 = vunpack.c.l.b16 %v1062
        %v1131 = vunpack.c.l.b16 %v1063
        %v1132 = vunpack.c.l.b16 %v1064
        %v1133 = vunpack.c.l.b16 %v1065
        %v1134 = vunpack.c.l.b16 %v1066
        %v1135 = vunpack.c.l.b16 %v1067
        %v1136 = vunpack.c.l.b16 %v1068
        %v1137 = vunpack.c.l.b16 %v1069
        %v1138 = vpack.c.b16 %v1107, %v1106
        %v1139 = vpack.c.b16 %v1109, %v1108
        %v1140 = vpack.c.b16 %v1111, %v1110
        %v1141 = vpack.c.b16 %v1113, %v1112
        %v1142 = vpack.c.b16 %v1115, %v1114
        %v1143 = vpack.c.b16 %v1117, %v1116
        %v1144 = vpack.c.b16 %v1119, %v1118
        %v1145 = vpack.c.b16 %v1121, %v1120
        %v1146 = vpack.c.b16 %v1123, %v1122
        %v1147 = vpack.c.b16 %v1125, %v1124
        %v1148 = vpack.c.b16 %v1127, %v1126
        %v1149 = vpack.c.b16 %v1129, %v1128
        %v1150 = vpack.c.b16 %v1131, %v1130
        %v1151 = vpack.c.b16 %v1133, %v1132
        %v1152 = vpack.c.b16 %v1135, %v1134
        %v1153 = vpack.c.b16 %v1137, %v1136
        %1170 = vmatprep.subr.bf16.mxu0 0
        %1171 = vmatpush1.bf16.msra.mxu0 %v1145
        %1172 = vmatprep.subr.bf16.mxu0 0
        %1173 = vmatpush1.bf16.msra.mxu0 %v1144
        %1174 = vmatprep.subr.bf16.mxu0 0
        %1175 = vmatpush1.bf16.msra.mxu0 %v1143
        %1176 = vmatprep.subr.bf16.mxu0 0
        %1177 = vmatpush1.bf16.msra.mxu0 %v1142
        %1178 = vmatprep.subr.bf16.mxu0 0
        %1179 = vmatpush1.bf16.msra.mxu0 %v1141
        %1180 = vmatprep.subr.bf16.mxu0 0
        %1181 = vmatpush1.bf16.msra.mxu0 %v1140
        %1182 = vmatprep.subr.bf16.mxu0 0
        %1183 = vmatpush1.bf16.msra.mxu0 %v1139
        %1184 = vmatprep.subr.bf16.mxu0 0
        %1185 = vmatpush1.bf16.msra.mxu0 %v1138
        %1186 = vmatprep.subr.bf16.mxu0 0
        %1187 = vmatpush2.bf16.msra.mxu0 %v1153
        %1188 = vmatprep.subr.bf16.mxu0 0
        %1189 = vmatpush2.bf16.msra.mxu0 %v1152
        %1190 = vmatprep.subr.bf16.mxu0 0
        %1191 = vmatpush2.bf16.msra.mxu0 %v1151
        %1192 = vmatprep.subr.bf16.mxu0 0
        %1193 = vmatpush2.bf16.msra.mxu0 %v1150
        %1194 = vmatprep.subr.bf16.mxu0 0
        %1195 = vmatpush2.bf16.msra.mxu0 %v1149
        %1196 = vmatprep.subr.bf16.mxu0 0
        %1197 = vmatpush2.bf16.msra.mxu0 %v1148
        %1198 = vmatprep.subr.bf16.mxu0 0
        %1199 = vmatpush2.bf16.msra.mxu0 %v1147
        %1200 = vmatprep.subr.bf16.mxu0 0
        %1201 = vmatpush2.bf16.msra.mxu0 %v1146
        %1202 = vmatprep.mubr.bf16.mxu0 %v1037
        %1203 = vmatmul.mubr.bf16.gmra.mxu0 %v1036
        %v1204 = vpop.f32.mrf.mxu0
        %v1205 = vadd.f32 %v1073, %v1204
        %v1206 = vpop.f32.mrf.mxu0
        %v1207 = vpop.f32.mrf.mxu0
        %v1208 = vpop.f32.mrf.mxu0
        %1209 = vdwg.mxu0
        %v1210 = vadd.f32 %v862, %v1205
        %1211 = vst [vmem:[#allocation2] sm:$0xff] %v1210
        %p1212 = scmp.eq.s32.totalorder %s32, 1
        // Predicated region
        $region89: #{tpu_custom_call.1} parent=63 // pred_check
          %p1213 = pneg %p1212
        $region90: #{tpu_custom_call.1} parent=63 // pred_check_branch
          %1215 = sbr.rel (%p1213) target = $region92
        $region91: #{tpu_custom_call.1} parent=63 // pred_region
          %v1216 = vld [vmem:[%s8] sm:$0x3]
          %vm1217 = vcmask 1047559
          %v1218 = vsel %vm1217, %v1210, 0.0
          %1219 = vadd.xlane.f32.xlu0 %v1218
          %v1220 = vpop.xlane.xlu0 %1219
          %v1221 = vmul.f32 %v1220, %v554
          %v1222 = vsub.f32 %v1210, %v1221
          %v1223 = vmul.f32 %v1222, %v1222
          %v1224 = vsel %vm1217, %v1223, 0.0
          %1225 = vadd.xlane.f32.xlu0 %v1224
          %v1226 = vpop.xlane.xlu0 %1225
          %v1227 = vmul.f32 %v1226, %v554
          %v1228 = vadd.f32 %v1227, 1e-05
          %v1229 = vrsqrt.pop %v1228
          %v1230 = vmul.f32 %v1222, %v1229
          %v1232 = vrot.slane %v1216, 1
          %v1234 = vmul.f32 %v1230, %v1232
          %v1235 = vrot.slane %v1216, 2
          %v1237 = vadd.f32 %v1234, %v1235
          %v1238 = vpack.c.bf16 %v1237, %v1237
          %v1239 = vld [vmem:[#allocation10] sm:$0xf]
          %v1240 = vld [vmem:[#allocation10 + $0x4] sm:$0xf]
          %v1241 = vld [vmem:[#allocation10 + $0x8] sm:$0xf]
          %v1242 = vld [vmem:[#allocation10 + $0xc] sm:$0xf]
          %v1243 = vld [vmem:[#allocation10 + $0x10] sm:$0xf]
          %v1244 = vld [vmem:[#allocation10 + $0x14] sm:$0xf]
          %v1245 = vld [vmem:[#allocation10 + $0x18] sm:$0xf]
          %v1246 = vld [vmem:[#allocation10 + $0x1c] sm:$0xf]
          %v1247 = vld [vmem:[#allocation10 + $0x20] sm:$0xf]
          %v1248 = vld [vmem:[#allocation10 + $0x24] sm:$0xf]
          %v1249 = vld [vmem:[#allocation10 + $0x28] sm:$0xf]
          %v1250 = vld [vmem:[#allocation10 + $0x2c] sm:$0xf]
          %v1251 = vld [vmem:[#allocation10 + $0x30] sm:$0xf]
          %v1252 = vld [vmem:[#allocation10 + $0x34] sm:$0xf]
          %v1253 = vld [vmem:[#allocation10 + $0x38] sm:$0xf]
          %v1254 = vld [vmem:[#allocation10 + $0x3c] sm:$0xf]
          %v1255 = vld [vmem:[%s10] sm:$0x1]
          %v1257 = vshrl.u32 %v1238, 16
          %v1259 = vrot.slane %v1257, 3
          %v1277 = vunpack.c.l.b16 %v1239
          %v1278 = vunpack.c.l.b16 %v1240
          %v1279 = vunpack.c.l.b16 %v1241
          %v1280 = vunpack.c.l.b16 %v1242
          %v1281 = vunpack.c.l.b16 %v1243
          %v1282 = vunpack.c.l.b16 %v1244
          %v1283 = vunpack.c.l.b16 %v1245
          %v1284 = vunpack.c.l.b16 %v1246
          %v1285 = vunpack.c.l.b16 %v1247
          %v1286 = vunpack.c.l.b16 %v1248
          %v1287 = vunpack.c.l.b16 %v1249
          %v1288 = vunpack.c.l.b16 %v1250
          %v1289 = vunpack.c.l.b16 %v1251
          %v1290 = vunpack.c.l.b16 %v1252
          %v1291 = vunpack.c.l.b16 %v1253
          %v1292 = vunpack.c.l.b16 %v1254
          %v1293 = vpack.c.b16 %v1278, %v1277
          %v1294 = vpack.c.b16 %v1280, %v1279
          %v1295 = vpack.c.b16 %v1282, %v1281
          %v1296 = vpack.c.b16 %v1284, %v1283
          %v1297 = vpack.c.b16 %v1286, %v1285
          %v1298 = vpack.c.b16 %v1288, %v1287
          %v1299 = vpack.c.b16 %v1290, %v1289
          %v1300 = vpack.c.b16 %v1292, %v1291
          %1309 = vmatprep.subr.bf16.mxu0 0
          %1310 = vmatpush1.bf16.msra.mxu0 %v1300
          %1311 = vmatprep.subr.bf16.mxu0 0
          %1312 = vmatpush1.bf16.msra.mxu0 %v1299
          %1313 = vmatprep.subr.bf16.mxu0 0
          %1314 = vmatpush1.bf16.msra.mxu0 %v1298
          %1315 = vmatprep.subr.bf16.mxu0 0
          %1316 = vmatpush1.bf16.msra.mxu0 %v1297
          %1317 = vmatprep.subr.bf16.mxu0 0
          %1318 = vmatpush1.bf16.msra.mxu0 %v1296
          %1319 = vmatprep.subr.bf16.mxu0 0
          %1320 = vmatpush1.bf16.msra.mxu0 %v1295
          %1321 = vmatprep.subr.bf16.mxu0 0
          %1322 = vmatpush1.bf16.msra.mxu0 %v1294
          %1323 = vmatprep.subr.bf16.mxu0 0
          %1324 = vmatpush1.bf16.msra.mxu0 %v1293
          %1325 = vmatprep.subr.bf16.mxu0 0
          %1326 = vmatpush2.bf16.msra.mxu0 0
          %1327 = vmatprep.subr.bf16.mxu0 0
          %1328 = vmatpush2.bf16.msra.mxu0 0
          %1329 = vmatprep.subr.bf16.mxu0 0
          %1330 = vmatpush2.bf16.msra.mxu0 0
          %1331 = vmatprep.subr.bf16.mxu0 0
          %1332 = vmatpush2.bf16.msra.mxu0 0
          %1333 = vmatprep.subr.bf16.mxu0 0
          %1334 = vmatpush2.bf16.msra.mxu0 0
          %1335 = vmatprep.subr.bf16.mxu0 0
          %1336 = vmatpush2.bf16.msra.mxu0 0
          %1337 = vmatprep.subr.bf16.mxu0 0
          %1338 = vmatpush2.bf16.msra.mxu0 0
          %1339 = vmatprep.subr.bf16.mxu0 0
          %1340 = vmatpush2.bf16.msra.mxu0 0
          %1341 = vmatprep.mubr.bf16.mxu0 0
          %1342 = vmatmul.mubr.bf16.gmra.mxu0 %v1259
          %v1343 = vpop.f32.mrf.mxu0
          %v1344 = vadd.f32 %v1255, %v1343
          %v1345 = vpop.f32.mrf.mxu0
          %v1346 = vpop.f32.mrf.mxu0
          %v1347 = vpop.f32.mrf.mxu0
          %1348 = vdwg.mxu0
          %1349 = vst [vmem:[%s530] sm:$0x1] %v1344
        $region92: #{tpu_custom_call.1} parent=63 // pred_fallthru
          _
        %s1350 = sand.u32 %s303, 1
        %s1351 = scalar_lea.sflag [#allocation5], %s1350
        %s1352 = sand.u32 %s303, 1
        %s1353 = scalar_lea.vmem [#allocation11], %s1352
        // Predicated region
        $region93: #{tpu_custom_call.1} parent=63 // pred_check
          %p1354 = pneg %p313
        $region94: #{tpu_custom_call.1} parent=63 // pred_check_branch
          %1356 = sbr.rel (%p1354) target = $region96
        $region95: #{tpu_custom_call.1} parent=63 // pred_region
          %s1358 = ssub.s32 16, 16
          %1359 = vsyncadd %s1351, %s1358
          %s1360 = smul.addr %s31, 16
          %s1361 = scalar_lea.hbm %s11, %s1360
          %s1363 = sshll.u32 %s1353, 4
          %s1364 = int_to_ptr.vmem [resolvable:$true] %s1363
          %1366 = dma.vmem_to_hbm [thread:$0]  %s1364, 16, %s1361, %s1351
        $region96: #{tpu_custom_call.1} parent=63 // pred_fallthru
          _
      $region64: #{tpu_custom_call.1} parent=5 // pred_fallthru
        _
      %p1367 = scmp.le.s32.totalorder 2, %s22
      // Predicated region
      $region97: #{tpu_custom_call.1} parent=5 // pred_check
        %p1368 = pneg %p1367
      $region98: #{tpu_custom_call.1} parent=5 // pred_check_branch
        %1370 = sbr.rel (%p1368) target = $region100
      $region99: #{tpu_custom_call.1} parent=5 // pred_region
        %s1371 = ssub.s32 %s22, 2
        // Predicated region
        $region101: #{tpu_custom_call.1} parent=99 // pred_check
          %p1372 = pneg %p319
        $region102: #{tpu_custom_call.1} parent=99 // pred_check_branch
          %1374 = sbr.rel (%p1372) target = $region104
        $region103: #{tpu_custom_call.1} parent=99 // pred_region
          %s1375 = sand.u32 %s304, 1
          %s1376 = scalar_lea.sflag [#allocation5], %s1375
          %s1377 = sand.u32 %s304, 1
          %s1378 = scalar_lea.vmem [#allocation11], %s1377
          %1379 = dma.done %s1376, 16
        $region104: #{tpu_custom_call.1} parent=99 // pred_fallthru
          _
      $region100: #{tpu_custom_call.1} parent=5 // pred_fallthru
        _
    $region6: #{tpu_custom_call.1} parent=1 // loop_footer
      %s26 = sadd.s32 1, %s22
    $region7: #{tpu_custom_call.1} parent=1 // loop_footer_branch
      %21 = sbr.rel target = $region3
    $region8: #{tpu_custom_call.1} parent=1 // loop_exit
      _
    %1380 = vsyncpa [#allocation4], 1
    %s1381 = scalar_lea.sflag [#allocation4], 1
    %1382 = vsyncpa %s1381, 1
    %1383 = vsyncpa [#allocation7], 1
    %1384 = vsyncpa [#allocation5], 1
    %s1385 = scalar_lea.sflag [#allocation5], 1
    %1386 = vsyncpa %s1385, 1

</llo_original>
